<compile_context>
chip_gen: v6e
topology: v6e:2x2x1
jax: 0.10.0
libtpu: 0.0.40
codegen_flags: <defaults>
</compile_context>

<pallas_src>
import numpy as np
import jax
import jax.numpy as jnp
from jax.experimental import pallas as pl
from jax.experimental.pallas import tpu as pltpu


_LIN = 1024    # per-image flattened padded-input lanes (30*30=900 used, rest zero)
_LCONV = 896   # conv-output lanes computed (indices 0..837 are the ones we need)
_LWIN = 768    # window-max lanes (anchors go up to 744)
_LOUT = 128    # padded lane width for pooled-features / logits outputs


def _cnn_fused_kernel(x_ref, w2_ref, bc_ref, sel_ref, wlf_ref, bl_ref,
                      feat_ref, logit_ref):
    # x_ref: (1, 3, 1024) one zero-padded image, channels-first, rows flattened
    #        with stride 30 (lane index = r*30 + c).
    x = x_ref[0]                                                  # (3, 1024)

    # ---- in-kernel im2col: 9 shifted lane-slices stacked along sublanes ----
    cols = [x[:, 30 * dh + dw: 30 * dh + dw + _LCONV]             # 9 x (3, 896)
            for dh in range(3) for dw in range(3)]
    cols.append(jnp.zeros((5, _LCONV), jnp.float32))              # pad K: 27 -> 32
    patches = jnp.concatenate(cols, axis=0)                       # (32, 896)

    # ---- conv 3x3 + bias + ReLU as one lane-dense MXU matmul ----
    conv = jnp.dot(w2_ref[...], patches,
                   preferred_element_type=jnp.float32)            # (16, 896)
    conv = jnp.maximum(conv + bc_ref[...], 0.0)
    # conv[o, 30*h + w] == relu(conv2d)[o, h, w]

    # ---- 4x4/4 max pool: window max via shifted slices (VPU) ----
    mw = _LCONV - 32                                              # 864
    m = conv[:, 0:mw]
    for j in range(1, 4):
        m = jnp.maximum(m, conv[:, j:j + mw])                     # max over kw offsets
    wmax = m[:, 0:_LWIN]
    for i in range(1, 4):
        wmax = jnp.maximum(wmax, m[:, 30 * i:30 * i + _LWIN])     # max over kh offsets
    # wmax[o, 120*ph + 4*pw] == maxpool4x4 output at (o, ph, pw)

    # ---- gather the 49 window anchors with a 0/1 selection matmul ----
    pooled = jnp.dot(wmax, sel_ref[...],
                     preferred_element_type=jnp.float32)          # (16, 128), lanes>=49 are 0
    feat_ref[0] = pooled                                          # NCHW flatten order (c, ph, pw)

    # ---- linear head 784 -> 3, emitted into a 128-lane padded slab ----
    # wlf[q, o*128 + k] = w_lin[k, o*49 + q]  (zero-padded), so the per-o
    # contributions are the "diagonal" 128-lane blocks of one matmul.
    mfull = jnp.dot(pooled, wlf_ref[...],
                    preferred_element_type=jnp.float32)           # (16, 2048)
    acc = bl_ref[...]                                             # (1, 128)
    for o in range(16):
        acc = acc + mfull[o:o + 1, o * _LOUT:(o + 1) * _LOUT]
    logit_ref[0] = acc


def cnn_forward(x_nchw, w_conv, b_conv, w_lin, b_lin):
    """Mirrors CNN.forward: returns (logits (B, 3), flat features (B, 784))."""
    x = x_nchw.astype(jnp.float32)
    B = x.shape[0]

    # --- wrapper-side layout plumbing (raw-sized input, no 9x im2col in HBM) ---
    xpad = jnp.pad(x, ((0, 0), (0, 0), (1, 1), (1, 1)))                     # (B,3,30,30)
    xf = jnp.pad(xpad.reshape(B, 3, 900), ((0, 0), (0, 0), (0, _LIN - 900)))  # (B,3,1024)

    # conv weight -> (o ; kh, kw, cin), contraction dim padded 27 -> 32
    w2 = jnp.pad(jnp.transpose(w_conv, (0, 2, 3, 1)).reshape(16, 27),
                 ((0, 0), (0, 5)))                                          # (16, 32)
    bc = b_conv.reshape(16, 1)

    # constant 0/1 anchor-selection matrix for the 7x7 pool grid
    sel_np = np.zeros((_LWIN, _LOUT), np.float32)
    for q in range(49):
        sel_np[120 * (q // 7) + 4 * (q % 7), q] = 1.0
    sel = jnp.asarray(sel_np)

    # linear weights -> wlf[q, o*128 + k] = w_lin[k, o*49 + q] (padded), bias -> (1,128)
    wl3 = jnp.pad(jnp.transpose(w_lin.reshape(3, 16, 49), (1, 2, 0)),
                  ((0, 0), (0, _LOUT - 49), (0, _LOUT - 3)))                # (16,128,128)
    wlf = jnp.transpose(wl3, (1, 0, 2)).reshape(_LOUT, 16 * _LOUT)          # (128, 2048)
    bl = jnp.pad(b_lin.reshape(1, 3), ((0, 0), (0, _LOUT - 3)))             # (1, 128)

    grid_spec = pltpu.PrefetchScalarGridSpec(
        num_scalar_prefetch=0,
        grid=(B,),
        in_specs=[
            pl.BlockSpec((1, 3, _LIN), lambda b: (b, 0, 0)),         # image
            pl.BlockSpec((16, 32), lambda b: (0, 0)),                # conv weight
            pl.BlockSpec((16, 1), lambda b: (0, 0)),                 # conv bias
            pl.BlockSpec((_LWIN, _LOUT), lambda b: (0, 0)),          # pool selection
            pl.BlockSpec((_LOUT, 16 * _LOUT), lambda b: (0, 0)),     # linear weight
            pl.BlockSpec((1, _LOUT), lambda b: (0, 0)),              # linear bias
        ],
        out_specs=[
            pl.BlockSpec((1, 16, _LOUT), lambda b: (b, 0, 0)),       # pooled features
            pl.BlockSpec((1, 1, _LOUT), lambda b: (b, 0, 0)),        # logits slab
        ],
    )

    feat_pad, logit_pad = pl.pallas_call(
        _cnn_fused_kernel,
        out_shape=(jax.ShapeDtypeStruct((B, 16, _LOUT), jnp.float32),
                   jax.ShapeDtypeStruct((B, 1, _LOUT), jnp.float32)),
        grid_spec=grid_spec,
        compiler_params=pltpu.CompilerParams(
            dimension_semantics=("parallel",)),
    )(xf, w2, bc, sel, wlf, bl)

    feat = feat_pad[:, :, :49].reshape(B, 16 * 7 * 7)   # matches torch x.view(B, -1)
    logits = logit_pad[:, 0, :3]
    return logits, feat


# ----------------------------- reference (pure XLA) -----------------------------

def _reference(x_nchw, w_conv, b_conv, w_lin, b_lin):
    y = jax.lax.conv_general_dilated(
        x_nchw.astype(jnp.float32), w_conv, (1, 1), ((1, 1), (1, 1)),
        dimension_numbers=("NCHW", "OIHW", "NCHW"))
    y = jnp.maximum(y + b_conv.reshape(1, 16, 1, 1), 0.0)
    y = jax.lax.reduce_window(y, -jnp.inf, jax.lax.max,
                              (1, 1, 4, 4), (1, 1, 4, 4), "VALID")
    feat = y.reshape(y.shape[0], -1)
    return feat @ w_lin.T + b_lin, feat


# ------------------------------------ main ---------------------------------------

if __name__ == "__main__":
    key = jax.random.PRNGKey(0)
    k1, k2, k3, k4, k5 = jax.random.split(key, 5)

    # deterministic synthetic parameters (shapes from nn.Conv2d / nn.Linear)
    w_conv = jax.random.normal(k1, (16, 3, 3, 3), jnp.float32) * 0.1   # OIHW
    b_conv = jax.random.normal(k2, (16,), jnp.float32) * 0.1
    w_lin = jax.random.normal(k3, (3, 16 * 7 * 7), jnp.float32) * 0.05
    b_lin = jax.random.normal(k4, (3,), jnp.float32) * 0.05

    # architecture implies 28x28 input (MaxPool2d(4): 28 -> 7); small batch = 2
    x = jax.random.normal(k5, (2, 3, 28, 28), jnp.float32)

    fwd = jax.jit(cnn_forward)
    logits, feat = jax.block_until_ready(fwd(x, w_conv, b_conv, w_lin, b_lin))

    ref_logits, ref_feat = _reference(x, w_conv, b_conv, w_lin, b_lin)
    assert logits.shape == (2, 3) and feat.shape == (2, 16 * 7 * 7)
    assert jnp.allclose(feat, ref_feat, rtol=1e-4, atol=1e-4), \
        float(jnp.max(jnp.abs(feat - ref_feat)))
    assert jnp.allclose(logits, ref_logits, rtol=1e-4, atol=1e-4), \
        float(jnp.max(jnp.abs(logits - ref_logits)))

    print("KERNEL_OK")
</pallas_src>

<mosaic_0001>
module attributes {stable_mosaic.version = 11 : i64} {
  func.func @_cnn_fused_kernel(%arg0: i32, %arg1: memref<1x3x1024xf32, #tpu.memory_space<vmem>>, %arg2: memref<16x32xf32, #tpu.memory_space<vmem>>, %arg3: memref<16x1xf32, #tpu.memory_space<vmem>>, %arg4: memref<768x128xf32, #tpu.memory_space<vmem>>, %arg5: memref<128x2048xf32, #tpu.memory_space<vmem>>, %arg6: memref<1x128xf32, #tpu.memory_space<vmem>>, %arg7: memref<1x16x128xf32, #tpu.memory_space<vmem>>, %arg8: memref<1x1x128xf32, #tpu.memory_space<vmem>>) attributes {dimension_semantics = [#tpu.dimension_semantics<parallel>], iteration_bounds = array<i64: 2>, scalar_prefetch = 0 : i64, scratch_operands = 0 : i64, tpu.core_type = #tpu.core_type<tc>, window_params = [{transform_indices = @transform_0, window_bounds = array<i64: 1, 3, 1024>}, {pipeline_mode = #tpu.pipeline_mode<synchronous>, transform_indices = @transform_1, window_bounds = array<i64: 16, 32>}, {pipeline_mode = #tpu.pipeline_mode<synchronous>, transform_indices = @transform_2, window_bounds = array<i64: 16, 1>}, {pipeline_mode = #tpu.pipeline_mode<synchronous>, transform_indices = @transform_3, window_bounds = array<i64: 768, 128>}, {pipeline_mode = #tpu.pipeline_mode<synchronous>, transform_indices = @transform_4, window_bounds = array<i64: 128, 2048>}, {pipeline_mode = #tpu.pipeline_mode<synchronous>, transform_indices = @transform_5, window_bounds = array<i64: 1, 128>}, {transform_indices = @transform_6, window_bounds = array<i64: 1, 16, 128>}, {transform_indices = @transform_7, window_bounds = array<i64: 1, 1, 128>}]} {
    %c0 = arith.constant 0 : index
    %c0_0 = arith.constant 0 : index
    %c0_1 = arith.constant 0 : index
    %0 = vector.load %arg1[%c0, %c0_0, %c0_1] : memref<1x3x1024xf32, #tpu.memory_space<vmem>>, vector<1x3x1024xf32>
    %1 = vector.shape_cast %0 : vector<1x3x1024xf32> to vector<3x1024xf32>
    %2 = vector.extract_strided_slice %1 {offsets = [0, 0], sizes = [3, 896], strides = [1, 1]} : vector<3x1024xf32> to vector<3x896xf32>
    %3 = vector.extract_strided_slice %1 {offsets = [0, 1], sizes = [3, 896], strides = [1, 1]} : vector<3x1024xf32> to vector<3x896xf32>
    %4 = vector.extract_strided_slice %1 {offsets = [0, 2], sizes = [3, 896], strides = [1, 1]} : vector<3x1024xf32> to vector<3x896xf32>
    %5 = vector.extract_strided_slice %1 {offsets = [0, 30], sizes = [3, 896], strides = [1, 1]} : vector<3x1024xf32> to vector<3x896xf32>
    %6 = vector.extract_strided_slice %1 {offsets = [0, 31], sizes = [3, 896], strides = [1, 1]} : vector<3x1024xf32> to vector<3x896xf32>
    %7 = vector.extract_strided_slice %1 {offsets = [0, 32], sizes = [3, 896], strides = [1, 1]} : vector<3x1024xf32> to vector<3x896xf32>
    %8 = vector.extract_strided_slice %1 {offsets = [0, 60], sizes = [3, 896], strides = [1, 1]} : vector<3x1024xf32> to vector<3x896xf32>
    %9 = vector.extract_strided_slice %1 {offsets = [0, 61], sizes = [3, 896], strides = [1, 1]} : vector<3x1024xf32> to vector<3x896xf32>
    %10 = vector.extract_strided_slice %1 {offsets = [0, 62], sizes = [3, 896], strides = [1, 1]} : vector<3x1024xf32> to vector<3x896xf32>
    %cst = arith.constant 0.000000e+00 : f32
    %11 = vector.broadcast %cst : f32 to vector<5x896xf32>
    %12 = tpu.concatenate %2, %3, %4, %5, %6, %7, %8, %9, %10, %11 in 0 : vector<3x896xf32>, vector<3x896xf32>, vector<3x896xf32>, vector<3x896xf32>, vector<3x896xf32>, vector<3x896xf32>, vector<3x896xf32>, vector<3x896xf32>, vector<3x896xf32>, vector<5x896xf32> -> vector<32x896xf32>
    %c0_2 = arith.constant 0 : index
    %c0_3 = arith.constant 0 : index
    %13 = vector.load %arg2[%c0_2, %c0_3] : memref<16x32xf32, #tpu.memory_space<vmem>>, vector<16x32xf32>
    %cst_4 = arith.constant dense<0.000000e+00> : vector<16x896xf32>
    %14 = tpu.matmul %13, %12, %cst_4 {dimension_numbers = #tpu.dot_dimension_numbers<[1], [0], [0], [1], [0, 0, 1, 1], [], []>} : vector<16x32xf32>, vector<32x896xf32>, vector<16x896xf32> -> vector<16x896xf32>
    %c0_5 = arith.constant 0 : index
    %c0_6 = arith.constant 0 : index
    %15 = vector.load %arg3[%c0_5, %c0_6] : memref<16x1xf32, #tpu.memory_space<vmem>>, vector<16x1xf32>
    %16 = vector.broadcast %15 : vector<16x1xf32> to vector<16x896xf32>
    %17 = arith.addf %14, %16 : vector<16x896xf32>
    %cst_7 = arith.constant 0.000000e+00 : f32
    %18 = vector.broadcast %cst_7 : f32 to vector<16x896xf32>
    %19 = arith.maximumf %17, %18 : vector<16x896xf32>
    %20 = vector.extract_strided_slice %19 {offsets = [0, 0], sizes = [16, 864], strides = [1, 1]} : vector<16x896xf32> to vector<16x864xf32>
    %21 = vector.extract_strided_slice %19 {offsets = [0, 1], sizes = [16, 864], strides = [1, 1]} : vector<16x896xf32> to vector<16x864xf32>
    %22 = arith.maximumf %20, %21 : vector<16x864xf32>
    %23 = vector.extract_strided_slice %19 {offsets = [0, 2], sizes = [16, 864], strides = [1, 1]} : vector<16x896xf32> to vector<16x864xf32>
    %24 = arith.maximumf %22, %23 : vector<16x864xf32>
    %25 = vector.extract_strided_slice %19 {offsets = [0, 3], sizes = [16, 864], strides = [1, 1]} : vector<16x896xf32> to vector<16x864xf32>
    %26 = arith.maximumf %24, %25 : vector<16x864xf32>
    %27 = vector.extract_strided_slice %26 {offsets = [0, 0], sizes = [16, 768], strides = [1, 1]} : vector<16x864xf32> to vector<16x768xf32>
    %28 = vector.extract_strided_slice %26 {offsets = [0, 30], sizes = [16, 768], strides = [1, 1]} : vector<16x864xf32> to vector<16x768xf32>
    %29 = arith.maximumf %27, %28 : vector<16x768xf32>
    %30 = vector.extract_strided_slice %26 {offsets = [0, 60], sizes = [16, 768], strides = [1, 1]} : vector<16x864xf32> to vector<16x768xf32>
    %31 = arith.maximumf %29, %30 : vector<16x768xf32>
    %32 = vector.extract_strided_slice %26 {offsets = [0, 90], sizes = [16, 768], strides = [1, 1]} : vector<16x864xf32> to vector<16x768xf32>
    %33 = arith.maximumf %31, %32 : vector<16x768xf32>
    %c0_8 = arith.constant 0 : index
    %c0_9 = arith.constant 0 : index
    %34 = vector.load %arg4[%c0_8, %c0_9] : memref<768x128xf32, #tpu.memory_space<vmem>>, vector<768x128xf32>
    %cst_10 = arith.constant dense<0.000000e+00> : vector<16x128xf32>
    %35 = tpu.matmul %33, %34, %cst_10 {dimension_numbers = #tpu.dot_dimension_numbers<[1], [0], [0], [1], [0, 0, 1, 1], [], []>} : vector<16x768xf32>, vector<768x128xf32>, vector<16x128xf32> -> vector<16x128xf32>
    %c0_11 = arith.constant 0 : index
    %c0_12 = arith.constant 0 : index
    %c0_13 = arith.constant 0 : index
    %36 = vector.load %arg7[%c0_11, %c0_12, %c0_13] : memref<1x16x128xf32, #tpu.memory_space<vmem>>, vector<1x16x128xf32>
    %37 = vector.shape_cast %36 : vector<1x16x128xf32> to vector<16x128xf32>
    %38 = vector.shape_cast %35 : vector<16x128xf32> to vector<1x16x128xf32>
    tpu.vector_store %arg7[%c0_11, %c0_12, %c0_13], %38 {strides = array<i32>} : memref<1x16x128xf32, #tpu.memory_space<vmem>>, vector<1x16x128xf32>,
    %c0_14 = arith.constant 0 : index
    %c0_15 = arith.constant 0 : index
    %39 = vector.load %arg5[%c0_14, %c0_15] : memref<128x2048xf32, #tpu.memory_space<vmem>>, vector<128x2048xf32>
    %cst_16 = arith.constant dense<0.000000e+00> : vector<16x2048xf32>
    %40 = tpu.matmul %35, %39, %cst_16 {dimension_numbers = #tpu.dot_dimension_numbers<[1], [0], [0], [1], [0, 0, 1, 1], [], []>} : vector<16x128xf32>, vector<128x2048xf32>, vector<16x2048xf32> -> vector<16x2048xf32>
    %c0_17 = arith.constant 0 : index
    %c0_18 = arith.constant 0 : index
    %41 = vector.load %arg6[%c0_17, %c0_18] : memref<1x128xf32, #tpu.memory_space<vmem>>, vector<1x128xf32>
    %42 = vector.extract_strided_slice %40 {offsets = [0, 0], sizes = [1, 128], strides = [1, 1]} : vector<16x2048xf32> to vector<1x128xf32>
    %43 = arith.addf %41, %42 : vector<1x128xf32>
    %44 = vector.extract_strided_slice %40 {offsets = [1, 128], sizes = [1, 128], strides = [1, 1]} : vector<16x2048xf32> to vector<1x128xf32>
    %45 = arith.addf %43, %44 : vector<1x128xf32>
    %46 = vector.extract_strided_slice %40 {offsets = [2, 256], sizes = [1, 128], strides = [1, 1]} : vector<16x2048xf32> to vector<1x128xf32>
    %47 = arith.addf %45, %46 : vector<1x128xf32>
    %48 = vector.extract_strided_slice %40 {offsets = [3, 384], sizes = [1, 128], strides = [1, 1]} : vector<16x2048xf32> to vector<1x128xf32>
    %49 = arith.addf %47, %48 : vector<1x128xf32>
    %50 = vector.extract_strided_slice %40 {offsets = [4, 512], sizes = [1, 128], strides = [1, 1]} : vector<16x2048xf32> to vector<1x128xf32>
    %51 = arith.addf %49, %50 : vector<1x128xf32>
    %52 = vector.extract_strided_slice %40 {offsets = [5, 640], sizes = [1, 128], strides = [1, 1]} : vector<16x2048xf32> to vector<1x128xf32>
    %53 = arith.addf %51, %52 : vector<1x128xf32>
    %54 = vector.extract_strided_slice %40 {offsets = [6, 768], sizes = [1, 128], strides = [1, 1]} : vector<16x2048xf32> to vector<1x128xf32>
    %55 = arith.addf %53, %54 : vector<1x128xf32>
    %56 = vector.extract_strided_slice %40 {offsets = [7, 896], sizes = [1, 128], strides = [1, 1]} : vector<16x2048xf32> to vector<1x128xf32>
    %57 = arith.addf %55, %56 : vector<1x128xf32>
    %58 = vector.extract_strided_slice %40 {offsets = [8, 1024], sizes = [1, 128], strides = [1, 1]} : vector<16x2048xf32> to vector<1x128xf32>
    %59 = arith.addf %57, %58 : vector<1x128xf32>
    %60 = vector.extract_strided_slice %40 {offsets = [9, 1152], sizes = [1, 128], strides = [1, 1]} : vector<16x2048xf32> to vector<1x128xf32>
    %61 = arith.addf %59, %60 : vector<1x128xf32>
    %62 = vector.extract_strided_slice %40 {offsets = [10, 1280], sizes = [1, 128], strides = [1, 1]} : vector<16x2048xf32> to vector<1x128xf32>
    %63 = arith.addf %61, %62 : vector<1x128xf32>
    %64 = vector.extract_strided_slice %40 {offsets = [11, 1408], sizes = [1, 128], strides = [1, 1]} : vector<16x2048xf32> to vector<1x128xf32>
    %65 = arith.addf %63, %64 : vector<1x128xf32>
    %66 = vector.extract_strided_slice %40 {offsets = [12, 1536], sizes = [1, 128], strides = [1, 1]} : vector<16x2048xf32> to vector<1x128xf32>
    %67 = arith.addf %65, %66 : vector<1x128xf32>
    %68 = vector.extract_strided_slice %40 {offsets = [13, 1664], sizes = [1, 128], strides = [1, 1]} : vector<16x2048xf32> to vector<1x128xf32>
    %69 = arith.addf %67, %68 : vector<1x128xf32>
    %70 = vector.extract_strided_slice %40 {offsets = [14, 1792], sizes = [1, 128], strides = [1, 1]} : vector<16x2048xf32> to vector<1x128xf32>
    %71 = arith.addf %69, %70 : vector<1x128xf32>
    %72 = vector.extract_strided_slice %40 {offsets = [15, 1920], sizes = [1, 128], strides = [1, 1]} : vector<16x2048xf32> to vector<1x128xf32>
    %73 = arith.addf %71, %72 : vector<1x128xf32>
    %c0_19 = arith.constant 0 : index
    %c0_20 = arith.constant 0 : index
    %c0_21 = arith.constant 0 : index
    %74 = vector.load %arg8[%c0_19, %c0_20, %c0_21] : memref<1x1x128xf32, #tpu.memory_space<vmem>>, vector<1x1x128xf32>
    %75 = vector.shape_cast %74 : vector<1x1x128xf32> to vector<1x128xf32>
    %76 = vector.shape_cast %73 : vector<1x128xf32> to vector<1x1x128xf32>
    tpu.vector_store %arg8[%c0_19, %c0_20, %c0_21], %76 {strides = array<i32>} : memref<1x1x128xf32, #tpu.memory_space<vmem>>, vector<1x1x128xf32>,
    return
  }
  func.func @transform_0(%arg0: i32) -> (i32, i32, i32) {
    %c0_i32 = arith.constant 0 : i32
    %c0_i32_0 = arith.constant 0 : i32
    %c0_i32_1 = arith.constant 0 : i32
    return %arg0, %c0_i32, %c0_i32_0 : i32, i32, i32
  }
  func.func @transform_1(%arg0: i32) -> (i32, i32) {
    %c0_i32 = arith.constant 0 : i32
    %c0_i32_0 = arith.constant 0 : i32
    %c0_i32_1 = arith.constant 0 : i32
    return %c0_i32, %c0_i32_0 : i32, i32
  }
  func.func @transform_2(%arg0: i32) -> (i32, i32) {
    %c0_i32 = arith.constant 0 : i32
    %c0_i32_0 = arith.constant 0 : i32
    %c0_i32_1 = arith.constant 0 : i32
    return %c0_i32, %c0_i32_0 : i32, i32
  }
  func.func @transform_3(%arg0: i32) -> (i32, i32) {
    %c0_i32 = arith.constant 0 : i32
    %c0_i32_0 = arith.constant 0 : i32
    %c0_i32_1 = arith.constant 0 : i32
    return %c0_i32, %c0_i32_0 : i32, i32
  }
  func.func @transform_4(%arg0: i32) -> (i32, i32) {
    %c0_i32 = arith.constant 0 : i32
    %c0_i32_0 = arith.constant 0 : i32
    %c0_i32_1 = arith.constant 0 : i32
    return %c0_i32, %c0_i32_0 : i32, i32
  }
  func.func @transform_5(%arg0: i32) -> (i32, i32) {
    %c0_i32 = arith.constant 0 : i32
    %c0_i32_0 = arith.constant 0 : i32
    %c0_i32_1 = arith.constant 0 : i32
    return %c0_i32, %c0_i32_0 : i32, i32
  }
  func.func @transform_6(%arg0: i32) -> (i32, i32, i32) {
    %c0_i32 = arith.constant 0 : i32
    %c0_i32_0 = arith.constant 0 : i32
    %c0_i32_1 = arith.constant 0 : i32
    return %arg0, %c0_i32, %c0_i32_0 : i32, i32, i32
  }
  func.func @transform_7(%arg0: i32) -> (i32, i32, i32) {
    %c0_i32 = arith.constant 0 : i32
    %c0_i32_0 = arith.constant 0 : i32
    %c0_i32_1 = arith.constant 0 : i32
    return %arg0, %c0_i32, %c0_i32_0 : i32, i32, i32
  }
}

</mosaic_0001>

<llo_original>
// kernel: cnn_forward.1
$region0: #{cnn_forward.1}
  #allocation0 [shape = 'u32[]', space=smem, size = 0x4, offset = 0x4, fixed_abs, tag = 'smem constant byte address 0x4 - core index']
  #allocation1 [shape = 'u32[144,128]{1,0:T(1,128)}', space=vmem, size = 0x12000, scoped, tag = 'internal scratch']
  %s0 = inlined_call_operand.vmem [shape: f32[2,3,1024], index: 0, kind: input, shape index: {}]
  %s1 = inlined_call_operand.vmem [shape: f32[16,32], index: 1, kind: input, shape index: {}]
  %s2 = inlined_call_operand.vmem [shape: f32[16,1], index: 2, kind: input, shape index: {}]
  %s3 = inlined_call_operand.vmem [shape: f32[768,128], index: 3, kind: input, shape index: {}]
  %s4 = inlined_call_operand.vmem [shape: f32[128,2048], index: 4, kind: input, shape index: {}]
  %s5 = inlined_call_operand.vmem [shape: f32[1,128], index: 5, kind: input, shape index: {}]
  %s6 = inlined_call_operand.vmem [shape: f32[2,16,128], index: 6, kind: output, shape index: {0}]
  %s7 = inlined_call_operand.hbm [shape: f32[2,1,128], index: 7, kind: output, shape index: {1}]
  %8 = xla_tuple %s6, %s7
  %s9 = sld [smem:[#allocation0]]
  $region65: #{cnn_forward.1} parent=0
    _
  %s11 = ssub.s32 1, %s9
  %s12 = scalar_select 0, %s11, %s9
  $region1: #{cnn_forward.1} parent=0
    #allocation2 [shape = 'u8[1024]{0}', space=vmem, size = 0x400, scoped, tag = 'output window, operand 1']
    #allocation3 [shape = 's32[2]{0}', space=sflag, size = 0x8, scoped, tag = 'scoped memory for cnn_forward.1']
    %13 = vsyncpa [#allocation3], 0
    %s14 = scalar_lea.sflag [#allocation3], 1
    %15 = vsyncpa %s14, 0
    loop: start=0, step=1, limit=4
    $region2: #{cnn_forward.1} parent=1 // loop_pre_header
      _
    $region3: #{cnn_forward.1} parent=1 // loop_header
      %s17 = sphi 0, %s21
      %p18 = scmp.ge.s32.totalorder %s17, 4
      %s27 = sphi 0, %s29
      %s30 = sphi 0, %s27
      %s31 = sphi 0, %s30
      %s47 = sphi 0, %s31
      %s51 = sphi 0, %s51
      %s53 = sphi 0, %s51
      %s54 = sphi 0, %s53
      %s68 = sphi 0, %s54
      %s72 = sphi 0, %s72
      %s74 = sphi 0, %s72
      %s75 = sphi 0, %s74
      %s89 = sphi 0, %s75
      %s93 = sphi 0, %s93
      %s95 = sphi 0, %s93
      %s96 = sphi 0, %s95
      %s110 = sphi 0, %s96
      %s114 = sphi 0, %s114
      %s116 = sphi 0, %s114
      %s117 = sphi 0, %s116
      %s131 = sphi 0, %s117
      %s135 = sphi 0, %s135
      %s137 = sphi 0, %s135
      %s138 = sphi 0, %s137
      %s152 = sphi 0, %s138
      %s158 = sphi 0, %s160
      %s161 = sphi 0, %s158
      %s162 = sphi 0, %s161
      %s178 = sphi 0, %s162
      %s184 = sphi 0, %s186
      %s187 = sphi 0, %s184
      %s188 = sphi 0, %s187
      %s204 = sphi 0, %s188
    $region4: #{cnn_forward.1} parent=1 // loop_header_branch
      %20 = sbr.rel (%p18) target = $region8
    $region5: #{cnn_forward.1} parent=1 // loop_body
      %s22 = ssub.s32 %s17, 1
      %s23 = ssub.s32 %s17, 2
      %s24 = sadd.s32 %s17, 1
      %s25 = ssub.s32 %s17, %s24
      %p26 = scmp.eq.s32.totalorder %s25, 0
      %s28 = sadd.s32 %s27, 1
      %s29 = scalar_select %p26, %s27, %s28
      %p32 = pneg %p26
      %p33 = scmp.eq.s32.totalorder %s17, 1
      %p34 = por %p32, %p33
      %p35 = scmp.ne.s32.totalorder %s27, %s30
      %p36 = scmp.eq.s32.totalorder %s17, 0
      %p37 = por %p35, %p36
      %p38 = scmp.ne.s32.totalorder %s27, %s30
      %p39 = scmp.eq.s32.totalorder %s22, 1
      %p40 = por %p38, %p39
      %p41 = scmp.ne.s32.totalorder %s30, %s31
      %p42 = scmp.eq.s32.totalorder %s22, 0
      %p43 = por %p41, %p42
      %p44 = scmp.ne.s32.totalorder %s30, %s31
      %p45 = scmp.eq.s32.totalorder %s23, 1
      %p46 = por %p44, %p45
      %p48 = scmp.ne.s32.totalorder %s31, %s47
      %p49 = scmp.eq.s32.totalorder %s23, 0
      %p50 = por %p48, %p49
      %s52 = sadd.s32 %s51, 1
      %p55 = scmp.eq.s32.totalorder %s17, 1
      %p56 = scmp.ne.s32.totalorder %s51, %s53
      %p57 = scmp.eq.s32.totalorder %s17, 0
      %p58 = por %p56, %p57
      %p59 = scmp.ne.s32.totalorder %s51, %s53
      %p60 = scmp.eq.s32.totalorder %s22, 1
      %p61 = por %p59, %p60
      %p62 = scmp.ne.s32.totalorder %s53, %s54
      %p63 = scmp.eq.s32.totalorder %s22, 0
      %p64 = por %p62, %p63
      %p65 = scmp.ne.s32.totalorder %s53, %s54
      %p66 = scmp.eq.s32.totalorder %s23, 1
      %p67 = por %p65, %p66
      %p69 = scmp.ne.s32.totalorder %s54, %s68
      %p70 = scmp.eq.s32.totalorder %s23, 0
      %p71 = por %p69, %p70
      %s73 = sadd.s32 %s72, 1
      %p76 = scmp.eq.s32.totalorder %s17, 1
      %p77 = scmp.ne.s32.totalorder %s72, %s74
      %p78 = scmp.eq.s32.totalorder %s17, 0
      %p79 = por %p77, %p78
      %p80 = scmp.ne.s32.totalorder %s72, %s74
      %p81 = scmp.eq.s32.totalorder %s22, 1
      %p82 = por %p80, %p81
      %p83 = scmp.ne.s32.totalorder %s74, %s75
      %p84 = scmp.eq.s32.totalorder %s22, 0
      %p85 = por %p83, %p84
      %p86 = scmp.ne.s32.totalorder %s74, %s75
      %p87 = scmp.eq.s32.totalorder %s23, 1
      %p88 = por %p86, %p87
      %p90 = scmp.ne.s32.totalorder %s75, %s89
      %p91 = scmp.eq.s32.totalorder %s23, 0
      %p92 = por %p90, %p91
      %s94 = sadd.s32 %s93, 1
      %p97 = scmp.eq.s32.totalorder %s17, 1
      %p98 = scmp.ne.s32.totalorder %s93, %s95
      %p99 = scmp.eq.s32.totalorder %s17, 0
      %p100 = por %p98, %p99
      %p101 = scmp.ne.s32.totalorder %s93, %s95
      %p102 = scmp.eq.s32.totalorder %s22, 1
      %p103 = por %p101, %p102
      %p104 = scmp.ne.s32.totalorder %s95, %s96
      %p105 = scmp.eq.s32.totalorder %s22, 0
      %p106 = por %p104, %p105
      %p107 = scmp.ne.s32.totalorder %s95, %s96
      %p108 = scmp.eq.s32.totalorder %s23, 1
      %p109 = por %p107, %p108
      %p111 = scmp.ne.s32.totalorder %s96, %s110
      %p112 = scmp.eq.s32.totalorder %s23, 0
      %p113 = por %p111, %p112
      %s115 = sadd.s32 %s114, 1
      %p118 = scmp.eq.s32.totalorder %s17, 1
      %p119 = scmp.ne.s32.totalorder %s114, %s116
      %p120 = scmp.eq.s32.totalorder %s17, 0
      %p121 = por %p119, %p120
      %p122 = scmp.ne.s32.totalorder %s114, %s116
      %p123 = scmp.eq.s32.totalorder %s22, 1
      %p124 = por %p122, %p123
      %p125 = scmp.ne.s32.totalorder %s116, %s117
      %p126 = scmp.eq.s32.totalorder %s22, 0
      %p127 = por %p125, %p126
      %p128 = scmp.ne.s32.totalorder %s116, %s117
      %p129 = scmp.eq.s32.totalorder %s23, 1
      %p130 = por %p128, %p129
      %p132 = scmp.ne.s32.totalorder %s117, %s131
      %p133 = scmp.eq.s32.totalorder %s23, 0
      %p134 = por %p132, %p133
      %s136 = sadd.s32 %s135, 1
      %p139 = scmp.eq.s32.totalorder %s17, 1
      %p140 = scmp.ne.s32.totalorder %s135, %s137
      %p141 = scmp.eq.s32.totalorder %s17, 0
      %p142 = por %p140, %p141
      %p143 = scmp.ne.s32.totalorder %s135, %s137
      %p144 = scmp.eq.s32.totalorder %s22, 1
      %p145 = por %p143, %p144
      %p146 = scmp.ne.s32.totalorder %s137, %s138
      %p147 = scmp.eq.s32.totalorder %s22, 0
      %p148 = por %p146, %p147
      %p149 = scmp.ne.s32.totalorder %s137, %s138
      %p150 = scmp.eq.s32.totalorder %s23, 1
      %p151 = por %p149, %p150
      %p153 = scmp.ne.s32.totalorder %s138, %s152
      %p154 = scmp.eq.s32.totalorder %s23, 0
      %p155 = por %p153, %p154
      %s156 = ssub.s32 %s17, %s24
      %p157 = scmp.eq.s32.totalorder %s156, 0
      %s159 = sadd.s32 %s158, 1
      %s160 = scalar_select %p157, %s158, %s159
      %p163 = pneg %p157
      %p164 = scmp.eq.s32.totalorder %s17, 1
      %p165 = por %p163, %p164
      %p166 = scmp.ne.s32.totalorder %s158, %s161
      %p167 = scmp.eq.s32.totalorder %s17, 0
      %p168 = por %p166, %p167
      %p169 = scmp.ne.s32.totalorder %s158, %s161
      %p170 = scmp.eq.s32.totalorder %s22, 1
      %p171 = por %p169, %p170
      %p172 = scmp.ne.s32.totalorder %s161, %s162
      %p173 = scmp.eq.s32.totalorder %s22, 0
      %p174 = por %p172, %p173
      %p175 = scmp.ne.s32.totalorder %s161, %s162
      %p176 = scmp.eq.s32.totalorder %s23, 1
      %p177 = por %p175, %p176
      %p179 = scmp.ne.s32.totalorder %s162, %s178
      %p180 = scmp.eq.s32.totalorder %s23, 0
      %p181 = por %p179, %p180
      %s182 = ssub.s32 %s17, %s24
      %p183 = scmp.eq.s32.totalorder %s182, 0
      %s185 = sadd.s32 %s184, 1
      %s186 = scalar_select %p183, %s184, %s185
      %p189 = pneg %p183
      %p190 = scmp.eq.s32.totalorder %s17, 1
      %p191 = por %p189, %p190
      %p192 = scmp.ne.s32.totalorder %s184, %s187
      %p193 = scmp.eq.s32.totalorder %s17, 0
      %p194 = por %p192, %p193
      %p195 = scmp.ne.s32.totalorder %s184, %s187
      %p196 = scmp.eq.s32.totalorder %s22, 1
      %p197 = por %p195, %p196
      %p198 = scmp.ne.s32.totalorder %s187, %s188
      %p199 = scmp.eq.s32.totalorder %s22, 0
      %p200 = por %p198, %p199
      %p201 = scmp.ne.s32.totalorder %s187, %s188
      %p202 = scmp.eq.s32.totalorder %s23, 1
      %p203 = por %p201, %p202
      %p205 = scmp.ne.s32.totalorder %s188, %s204
      %p206 = scmp.eq.s32.totalorder %s23, 0
      %p207 = por %p205, %p206
      %p208 = scmp.le.s32.totalorder 1, %s17
      %p209 = scmp.lt.s32.totalorder %s17, 3
      %p210 = pnand %p208, %p209
      %p211 = pneg %p210
      // Predicated region
      $region9: #{cnn_forward.1} parent=5 // pred_check
        _
      $region10: #{cnn_forward.1} parent=5 // pred_check_branch
        %213 = sbr.rel (%p210) target = $region12
      $region11: #{cnn_forward.1} parent=5 // pred_region
        %s214 = ssub.s32 %s17, 1
        // Predicated region
        $region13: #{cnn_forward.1} parent=11 // pred_check
          %p215 = pneg %p64
        $region14: #{cnn_forward.1} parent=11 // pred_check_branch
          %217 = sbr.rel (%p215) target = $region16
        $region15: #{cnn_forward.1} parent=11 // pred_region
          _
        $region16: #{cnn_forward.1} parent=11 // pred_fallthru
          _
        // Predicated region
        $region17: #{cnn_forward.1} parent=11 // pred_check
          %p218 = pneg %p85
        $region18: #{cnn_forward.1} parent=11 // pred_check_branch
          %220 = sbr.rel (%p218) target = $region20
        $region19: #{cnn_forward.1} parent=11 // pred_region
          _
        $region20: #{cnn_forward.1} parent=11 // pred_fallthru
          _
        // Predicated region
        $region21: #{cnn_forward.1} parent=11 // pred_check
          %p221 = pneg %p106
        $region22: #{cnn_forward.1} parent=11 // pred_check_branch
          %223 = sbr.rel (%p221) target = $region24
        $region23: #{cnn_forward.1} parent=11 // pred_region
          _
        $region24: #{cnn_forward.1} parent=11 // pred_fallthru
          _
        // Predicated region
        $region25: #{cnn_forward.1} parent=11 // pred_check
          %p224 = pneg %p127
        $region26: #{cnn_forward.1} parent=11 // pred_check_branch
          %226 = sbr.rel (%p224) target = $region28
        $region27: #{cnn_forward.1} parent=11 // pred_region
          _
        $region28: #{cnn_forward.1} parent=11 // pred_fallthru
          _
        // Predicated region
        $region29: #{cnn_forward.1} parent=11 // pred_check
          %p227 = pneg %p148
        $region30: #{cnn_forward.1} parent=11 // pred_check_branch
          %229 = sbr.rel (%p227) target = $region32
        $region31: #{cnn_forward.1} parent=11 // pred_region
          _
        $region32: #{cnn_forward.1} parent=11 // pred_fallthru
          _
      $region12: #{cnn_forward.1} parent=5 // pred_fallthru
        _
      %p230 = scmp.lt.s32.totalorder %s17, 2
      // Predicated region
      $region33: #{cnn_forward.1} parent=5 // pred_check
        %p231 = pneg %p230
      $region34: #{cnn_forward.1} parent=5 // pred_check_branch
        %233 = sbr.rel (%p231) target = $region36
      $region35: #{cnn_forward.1} parent=5 // pred_region
        // Predicated region
        $region37: #{cnn_forward.1} parent=35 // pred_check
          %p234 = pneg %p37
        $region38: #{cnn_forward.1} parent=35 // pred_check_branch
          %236 = sbr.rel (%p234) target = $region40
        $region39: #{cnn_forward.1} parent=35 // pred_region
          %p237 = scmp.lt.s32.totalorder %s17, 1
          %s238 = scalar_select %p237, %s17, 1
          %s239 = smul.addr %s238, 8
          %s240 = smul.addr %s239, 4
          %s241 = scalar_lea.vmem %s0, %s240
        $region40: #{cnn_forward.1} parent=35 // pred_fallthru
          _
      $region36: #{cnn_forward.1} parent=5 // pred_fallthru
        _
      %p242 = scmp.le.s32.totalorder 1, %s17
      %p243 = scmp.lt.s32.totalorder %s17, 3
      %p244 = pnand %p242, %p243
      %p245 = pneg %p244
      // Predicated region
      $region41: #{cnn_forward.1} parent=5 // pred_check
        _
      $region42: #{cnn_forward.1} parent=5 // pred_check_branch
        %247 = sbr.rel (%p244) target = $region44
      $region43: #{cnn_forward.1} parent=5 // pred_region
        %s248 = ssub.s32 %s17, 1
        %p249 = scmp.lt.s32.totalorder %s22, 1
        %s250 = scalar_select %p249, %s22, 1
        %s251 = smul.addr %s250, 8
        %s252 = smul.addr %s251, 4
        %s253 = scalar_lea.vmem %s0, %s252
        %p254 = pneg %p43
        %p255 = pneg %p40
        %p256 = pneg %p64
        %p257 = pneg %p61
        %p258 = pneg %p85
        %p259 = pneg %p82
        %p260 = pneg %p106
        %p261 = pneg %p103
        %p262 = pneg %p127
        %p263 = pneg %p124
        %p264 = pneg %p148
        %p265 = pneg %p145
        %p266 = pneg %p174
        %p267 = pneg %p171
        %p268 = scmp.lt.s32.totalorder %s22, 1
        %s269 = scalar_select %p268, %s22, 1
        %s270 = smul.addr %s269, 2
        %s271 = smul.addr %s270, 8
        %s272 = scalar_lea.vmem %s6, %s271
        %p273 = pneg %p200
        %p274 = pneg %p197
        %s275 = sand.u32 %s187, 1
        %s276 = scalar_lea.sflag [#allocation3], %s275
        %s277 = sand.u32 %s187, 1
        %s278 = scalar_lea.vmem [#allocation2], %s277
        %p279 = scmp.lt.s32.totalorder %s22, 1
        %s280 = scalar_select %p279, %s22, 1
        %s281 = smul.addr %s280, 8
        %s282 = smul.addr %s281, 4
        %s283 = scalar_lea.vmem %s0, %s282
        %p284 = scmp.lt.s32.totalorder %s22, 1
        %s285 = scalar_select %p284, %s22, 1
        %s286 = smul.addr %s285, 2
        %s287 = smul.addr %s286, 8
        %s288 = scalar_lea.vmem %s6, %s287
        %v289 = vld [vmem:[%s283] sm:$0x77]
        %v290 = vld [vmem:[%s283 + $0x8] sm:$0x77]
        %v291 = vld [vmem:[%s283 + $0x10] sm:$0x77]
        %v292 = vld [vmem:[%s283 + $0x18] sm:$0x77]
        %v297 = vcombine.high %v289, %v289
        %v298 = vcombine.high %v290, %v290
        %v299 = vcombine.high %v291, %v291
        %v303 = vcombine.high %v292, %v292
        %v304 = vrot.slane %v289, 5
        %v305 = vrot.slane %v297, 5
        %v306 = vrot.slane %v290, 5
        %v307 = vrot.slane %v298, 5
        %v308 = vrot.slane %v291, 5
        %v309 = vrot.slane %v299, 5
        %v310 = vrot.slane %v292, 5
        %v311 = vrot.slane %v303, 5
        %312 = vrot.lane.b32.xlu0 %v304, 127
        %v313 = vpop.permute.xlu0 %312
        %314 = vrot.lane.b32.xlu0 %v305, 127
        %v315 = vpop.permute.xlu0 %314
        %316 = vrot.lane.b32.xlu0 %v306, 127
        %v317 = vpop.permute.xlu0 %316
        %318 = vrot.lane.b32.xlu0 %v307, 127
        %v319 = vpop.permute.xlu0 %318
        %320 = vrot.lane.b32.xlu0 %v308, 127
        %v321 = vpop.permute.xlu0 %320
        %322 = vrot.lane.b32.xlu0 %v309, 127
        %v323 = vpop.permute.xlu0 %322
        %324 = vrot.lane.b32.xlu0 %v310, 127
        %v325 = vpop.permute.xlu0 %324
        %326 = vrot.lane.b32.xlu0 %v311, 127
        %v327 = vpop.permute.xlu0 %326
        %vm328 = vcmask 1039360
        %v329 = vsel %vm328, %v313, %v315
        %v330 = vsel %vm328, %v315, %v317
        %v331 = vsel %vm328, %v317, %v319
        %v332 = vsel %vm328, %v319, %v321
        %v333 = vsel %vm328, %v321, %v323
        %v334 = vsel %vm328, %v323, %v325
        %v335 = vsel %vm328, %v325, %v327
        %v343 = vrot.slane %v289, 2
        %v344 = vrot.slane %v297, 2
        %v345 = vrot.slane %v290, 2
        %v346 = vrot.slane %v298, 2
        %v347 = vrot.slane %v291, 2
        %v348 = vrot.slane %v299, 2
        %v349 = vrot.slane %v292, 2
        %v350 = vrot.slane %v303, 2
        %351 = vrot.lane.b32.xlu0 %v343, 126
        %v352 = vpop.permute.xlu0 %351
        %353 = vrot.lane.b32.xlu0 %v344, 126
        %v354 = vpop.permute.xlu0 %353
        %355 = vrot.lane.b32.xlu0 %v345, 126
        %v356 = vpop.permute.xlu0 %355
        %357 = vrot.lane.b32.xlu0 %v346, 126
        %v358 = vpop.permute.xlu0 %357
        %359 = vrot.lane.b32.xlu0 %v347, 126
        %v360 = vpop.permute.xlu0 %359
        %361 = vrot.lane.b32.xlu0 %v348, 126
        %v362 = vpop.permute.xlu0 %361
        %363 = vrot.lane.b32.xlu0 %v349, 126
        %v364 = vpop.permute.xlu0 %363
        %365 = vrot.lane.b32.xlu0 %v350, 126
        %v366 = vpop.permute.xlu0 %365
        %vm367 = vcmask 1031168
        %v368 = vsel %vm367, %v352, %v354
        %v369 = vsel %vm367, %v354, %v356
        %v370 = vsel %vm367, %v356, %v358
        %v371 = vsel %vm367, %v358, %v360
        %v372 = vsel %vm367, %v360, %v362
        %v373 = vsel %vm367, %v362, %v364
        %v374 = vsel %vm367, %v364, %v366
        %v382 = vrot.slane %v289, 7
        %v383 = vrot.slane %v297, 7
        %v384 = vrot.slane %v290, 7
        %v385 = vrot.slane %v298, 7
        %v386 = vrot.slane %v291, 7
        %v387 = vrot.slane %v299, 7
        %v388 = vrot.slane %v292, 7
        %v389 = vrot.slane %v303, 7
        %390 = vrot.lane.b32.xlu0 %v382, 98
        %v391 = vpop.permute.xlu0 %390
        %392 = vrot.lane.b32.xlu0 %v383, 98
        %v393 = vpop.permute.xlu0 %392
        %394 = vrot.lane.b32.xlu0 %v384, 98
        %v395 = vpop.permute.xlu0 %394
        %396 = vrot.lane.b32.xlu0 %v385, 98
        %v397 = vpop.permute.xlu0 %396
        %398 = vrot.lane.b32.xlu0 %v386, 98
        %v399 = vpop.permute.xlu0 %398
        %400 = vrot.lane.b32.xlu0 %v387, 98
        %v401 = vpop.permute.xlu0 %400
        %402 = vrot.lane.b32.xlu0 %v388, 98
        %v403 = vpop.permute.xlu0 %402
        %404 = vrot.lane.b32.xlu0 %v389, 98
        %v405 = vpop.permute.xlu0 %404
        %vm406 = vcmask 801792
        %v407 = vsel %vm406, %v391, %v393
        %v408 = vsel %vm406, %v393, %v395
        %v409 = vsel %vm406, %v395, %v397
        %v410 = vsel %vm406, %v397, %v399
        %v411 = vsel %vm406, %v399, %v401
        %v412 = vsel %vm406, %v401, %v403
        %v413 = vsel %vm406, %v403, %v405
        %v421 = vcombine.low %v289, %v289
        %v422 = vcombine.low %v290, %v290
        %v423 = vcombine.low %v291, %v291
        %v424 = vcombine.low %v292, %v292
        %425 = vrot.lane.b32.xlu0 %v421, 97
        %v426 = vpop.permute.xlu0 %425
        %427 = vrot.lane.b32.xlu0 %v289, 97
        %v428 = vpop.permute.xlu0 %427
        %429 = vrot.lane.b32.xlu0 %v422, 97
        %v430 = vpop.permute.xlu0 %429
        %431 = vrot.lane.b32.xlu0 %v290, 97
        %v432 = vpop.permute.xlu0 %431
        %433 = vrot.lane.b32.xlu0 %v423, 97
        %v434 = vpop.permute.xlu0 %433
        %435 = vrot.lane.b32.xlu0 %v291, 97
        %v436 = vpop.permute.xlu0 %435
        %437 = vrot.lane.b32.xlu0 %v424, 97
        %v438 = vpop.permute.xlu0 %437
        %439 = vrot.lane.b32.xlu0 %v292, 97
        %v440 = vpop.permute.xlu0 %439
        %vm441 = vcmask 793600
        %v442 = vsel %vm441, %v426, %v428
        %v443 = vsel %vm441, %v428, %v430
        %v444 = vsel %vm441, %v430, %v432
        %v445 = vsel %vm441, %v432, %v434
        %v446 = vsel %vm441, %v434, %v436
        %v447 = vsel %vm441, %v436, %v438
        %v448 = vsel %vm441, %v438, %v440
        %v456 = vrot.slane %v289, 1
        %v457 = vrot.slane %v297, 1
        %v458 = vrot.slane %v290, 1
        %v459 = vrot.slane %v298, 1
        %v460 = vrot.slane %v291, 1
        %v461 = vrot.slane %v299, 1
        %v462 = vrot.slane %v292, 1
        %v463 = vrot.slane %v303, 1
        %464 = vrot.lane.b32.xlu0 %v456, 96
        %v465 = vpop.permute.xlu0 %464
        %466 = vrot.lane.b32.xlu0 %v457, 96
        %v467 = vpop.permute.xlu0 %466
        %468 = vrot.lane.b32.xlu0 %v458, 96
        %v469 = vpop.permute.xlu0 %468
        %470 = vrot.lane.b32.xlu0 %v459, 96
        %v471 = vpop.permute.xlu0 %470
        %472 = vrot.lane.b32.xlu0 %v460, 96
        %v473 = vpop.permute.xlu0 %472
        %474 = vrot.lane.b32.xlu0 %v461, 96
        %v475 = vpop.permute.xlu0 %474
        %476 = vrot.lane.b32.xlu0 %v462, 96
        %v477 = vpop.permute.xlu0 %476
        %478 = vrot.lane.b32.xlu0 %v463, 96
        %v479 = vpop.permute.xlu0 %478
        %vm480 = vcmask 785408
        %v481 = vsel %vm480, %v465, %v467
        %v482 = vsel %vm480, %v467, %v469
        %v483 = vsel %vm480, %v469, %v471
        %v484 = vsel %vm480, %v471, %v473
        %v485 = vsel %vm480, %v473, %v475
        %v486 = vsel %vm480, %v475, %v477
        %v487 = vsel %vm480, %v477, %v479
        %v495 = vrot.slane %v289, 6
        %v496 = vrot.slane %v297, 6
        %v497 = vrot.slane %v290, 6
        %v498 = vrot.slane %v298, 6
        %v499 = vrot.slane %v291, 6
        %v500 = vrot.slane %v299, 6
        %v501 = vrot.slane %v292, 6
        %v502 = vrot.slane %v303, 6
        %503 = vrot.lane.b32.xlu0 %v495, 68
        %v504 = vpop.permute.xlu0 %503
        %505 = vrot.lane.b32.xlu0 %v496, 68
        %v506 = vpop.permute.xlu0 %505
        %507 = vrot.lane.b32.xlu0 %v497, 68
        %v508 = vpop.permute.xlu0 %507
        %509 = vrot.lane.b32.xlu0 %v498, 68
        %v510 = vpop.permute.xlu0 %509
        %511 = vrot.lane.b32.xlu0 %v499, 68
        %v512 = vpop.permute.xlu0 %511
        %513 = vrot.lane.b32.xlu0 %v500, 68
        %v514 = vpop.permute.xlu0 %513
        %515 = vrot.lane.b32.xlu0 %v501, 68
        %v516 = vpop.permute.xlu0 %515
        %517 = vrot.lane.b32.xlu0 %v502, 68
        %v518 = vpop.permute.xlu0 %517
        %vm519 = vcmask 556032
        %v520 = vsel %vm519, %v504, %v506
        %v521 = vsel %vm519, %v506, %v508
        %v522 = vsel %vm519, %v508, %v510
        %v523 = vsel %vm519, %v510, %v512
        %v524 = vsel %vm519, %v512, %v514
        %v525 = vsel %vm519, %v514, %v516
        %v526 = vsel %vm519, %v516, %v518
        %v534 = vrot.slane %v289, 3
        %v535 = vrot.slane %v297, 3
        %v536 = vrot.slane %v290, 3
        %v537 = vrot.slane %v298, 3
        %v538 = vrot.slane %v291, 3
        %v539 = vrot.slane %v299, 3
        %v540 = vrot.slane %v292, 3
        %v541 = vrot.slane %v303, 3
        %542 = vrot.lane.b32.xlu0 %v534, 67
        %v543 = vpop.permute.xlu0 %542
        %544 = vrot.lane.b32.xlu0 %v535, 67
        %v545 = vpop.permute.xlu0 %544
        %546 = vrot.lane.b32.xlu0 %v536, 67
        %v547 = vpop.permute.xlu0 %546
        %548 = vrot.lane.b32.xlu0 %v537, 67
        %v549 = vpop.permute.xlu0 %548
        %550 = vrot.lane.b32.xlu0 %v538, 67
        %v551 = vpop.permute.xlu0 %550
        %552 = vrot.lane.b32.xlu0 %v539, 67
        %v553 = vpop.permute.xlu0 %552
        %554 = vrot.lane.b32.xlu0 %v540, 67
        %v555 = vpop.permute.xlu0 %554
        %556 = vrot.lane.b32.xlu0 %v541, 67
        %v557 = vpop.permute.xlu0 %556
        %vm558 = vcmask 547840
        %v559 = vsel %vm558, %v543, %v545
        %v560 = vsel %vm558, %v545, %v547
        %v561 = vsel %vm558, %v547, %v549
        %v562 = vsel %vm558, %v549, %v551
        %v563 = vsel %vm558, %v551, %v553
        %v564 = vsel %vm558, %v553, %v555
        %v565 = vsel %vm558, %v555, %v557
        %573 = vrot.lane.b32.xlu0 %v289, 66
        %v574 = vpop.permute.xlu0 %573
        %575 = vrot.lane.b32.xlu0 %v297, 66
        %v576 = vpop.permute.xlu0 %575
        %577 = vrot.lane.b32.xlu0 %v290, 66
        %v578 = vpop.permute.xlu0 %577
        %579 = vrot.lane.b32.xlu0 %v298, 66
        %v580 = vpop.permute.xlu0 %579
        %581 = vrot.lane.b32.xlu0 %v291, 66
        %v582 = vpop.permute.xlu0 %581
        %583 = vrot.lane.b32.xlu0 %v299, 66
        %v584 = vpop.permute.xlu0 %583
        %585 = vrot.lane.b32.xlu0 %v292, 66
        %v586 = vpop.permute.xlu0 %585
        %587 = vrot.lane.b32.xlu0 %v303, 66
        %v588 = vpop.permute.xlu0 %587
        %vm589 = vcmask 539648
        %v590 = vsel %vm589, %v574, %v576
        %v591 = vsel %vm589, %v576, %v578
        %v592 = vsel %vm589, %v578, %v580
        %v593 = vsel %vm589, %v580, %v582
        %v594 = vsel %vm589, %v582, %v584
        %v595 = vsel %vm589, %v584, %v586
        %v596 = vsel %vm589, %v586, %v588
        %vm604 = vcmask 1042432
        %v605 = vsel %vm604, %v289, %v329
        %v606 = vsel %vm604, %v297, %v330
        %v607 = vsel %vm604, %v290, %v331
        %v608 = vsel %vm604, %v298, %v332
        %v609 = vsel %vm604, %v291, %v333
        %v610 = vsel %vm604, %v299, %v334
        %v611 = vsel %vm604, %v292, %v335
        %vm612 = vcmask 1045504
        %v613 = vsel %vm612, %v605, %v368
        %v614 = vsel %vm612, %v606, %v369
        %v615 = vsel %vm612, %v607, %v370
        %v616 = vsel %vm612, %v608, %v371
        %v617 = vsel %vm612, %v609, %v372
        %v618 = vsel %vm612, %v610, %v373
        %v619 = vsel %vm612, %v611, %v374
        %vm620 = vcmask 1040384
        %v621 = vsel %vm620, %v368, %v407
        %v622 = vsel %vm620, %v369, %v408
        %v623 = vsel %vm620, %v370, %v409
        %v624 = vsel %vm620, %v371, %v410
        %v625 = vsel %vm620, %v372, %v411
        %v626 = vsel %vm620, %v373, %v412
        %v627 = vsel %vm620, %v374, %v413
        %vm628 = vcmask 1043456
        %v629 = vsel %vm628, %v621, %v442
        %v630 = vsel %vm628, %v622, %v443
        %v631 = vsel %vm628, %v623, %v444
        %v632 = vsel %vm628, %v624, %v445
        %v633 = vsel %vm628, %v625, %v446
        %v634 = vsel %vm628, %v626, %v447
        %v635 = vsel %vm628, %v627, %v448
        %vm636 = vcmask 1046528
        %v637 = vsel %vm636, %v629, %v481
        %v638 = vsel %vm636, %v630, %v482
        %v639 = vsel %vm636, %v631, %v483
        %v640 = vsel %vm636, %v632, %v484
        %v641 = vsel %vm636, %v633, %v485
        %v642 = vsel %vm636, %v634, %v486
        %v643 = vsel %vm636, %v635, %v487
        %vm644 = vcmask 1041408
        %v645 = vsel %vm644, %v481, %v520
        %v646 = vsel %vm644, %v482, %v521
        %v647 = vsel %vm644, %v483, %v522
        %v648 = vsel %vm644, %v484, %v523
        %v649 = vsel %vm644, %v485, %v524
        %v650 = vsel %vm644, %v486, %v525
        %v651 = vsel %vm644, %v487, %v526
        %vm652 = vcmask 1044480
        %v653 = vsel %vm652, %v645, %v559
        %v654 = vsel %vm652, %v646, %v560
        %v655 = vsel %vm652, %v647, %v561
        %v656 = vsel %vm652, %v648, %v562
        %v657 = vsel %vm652, %v649, %v563
        %v658 = vsel %vm652, %v650, %v564
        %v659 = vsel %vm652, %v651, %v565
        %v660 = vsel %vm604, %v590, 0.0
        %v661 = vsel %vm604, %v591, 0.0
        %v662 = vsel %vm604, %v592, 0.0
        %v663 = vsel %vm604, %v593, 0.0
        %v664 = vsel %vm604, %v594, 0.0
        %v665 = vsel %vm604, %v595, 0.0
        %v666 = vsel %vm604, %v596, 0.0
        %v667 = vld [vmem:[%s1] sm:$0xff]
        %v668 = vld [vmem:[%s1 + $0x8] sm:$0xff]
        %v669 = vld [vmem:[%s2] sm:$0xff]
        %v670 = vld [vmem:[%s2 + $0x8] sm:$0xff]
        %672 = vset.pattern.permute.xlu0 0
        %673 = vperm.xlu0 %672, %v669
        %v674 = vpop.permute.xlu0 %673
        %677 = vset.pattern.permute.xlu0 0
        %678 = vperm.xlu0 %677, %v670
        %v679 = vpop.permute.xlu0 %678
        %vm681 = vcmask 261120
        %v683 = vsel %vm681, %v667, 0
        %v686 = vsel %vm681, %v668, 0
        %688 = vmatprep.subr.mxu0 0.0
        %689 = vmatpush1.msra.mxu0 0.0
        %690 = vmatprep.subr.mxu0 0.0
        %691 = vmatpush1.msra.mxu0 0.0
        %692 = vmatprep.subr.mxu0 0.0
        %693 = vmatpush1.msra.mxu0 0.0
        %694 = vmatprep.subr.mxu0 0.0
        %695 = vmatpush1.msra.mxu0 0.0
        %696 = vmatprep.subr.mxu0 0.0
        %697 = vmatpush1.msra.mxu0 0.0
        %698 = vmatprep.subr.mxu0 0.0
        %699 = vmatpush1.msra.mxu0 0.0
        %700 = vmatprep.subr.mxu0 0.0
        %701 = vmatpush1.msra.mxu0 0.0
        %702 = vmatprep.subr.mxu0 0.0
        %703 = vmatpush1.msra.mxu0 0.0
        %704 = vmatprep.subr.mxu0 0.0
        %705 = vmatpush1.msra.mxu0 0.0
        %706 = vmatprep.subr.mxu0 0.0
        %707 = vmatpush1.msra.mxu0 0.0
        %708 = vmatprep.subr.mxu0 0.0
        %709 = vmatpush1.msra.mxu0 0.0
        %710 = vmatprep.subr.mxu0 0.0
        %711 = vmatpush1.msra.mxu0 0.0
        %712 = vmatprep.subr.mxu0 %v661
        %713 = vmatpush1.msra.mxu0 %v660
        %714 = vmatprep.subr.mxu0 %v654
        %715 = vmatpush1.msra.mxu0 %v653
        %716 = vmatprep.subr.mxu0 %v638
        %717 = vmatpush1.msra.mxu0 %v637
        %718 = vmatprep.subr.mxu0 %v614
        %719 = vmatpush1.msra.mxu0 %v613
        %720 = vmatprep.subr.mxu0 0.0
        %721 = vmatpush2.msra.mxu0 0.0
        %722 = vmatprep.subr.mxu0 0.0
        %723 = vmatpush2.msra.mxu0 0.0
        %724 = vmatprep.subr.mxu0 0.0
        %725 = vmatpush2.msra.mxu0 0.0
        %726 = vmatprep.subr.mxu0 0.0
        %727 = vmatpush2.msra.mxu0 0.0
        %728 = vmatprep.subr.mxu0 0.0
        %729 = vmatpush2.msra.mxu0 0.0
        %730 = vmatprep.subr.mxu0 0.0
        %731 = vmatpush2.msra.mxu0 0.0
        %732 = vmatprep.subr.mxu0 0.0
        %733 = vmatpush2.msra.mxu0 0.0
        %734 = vmatprep.subr.mxu0 0.0
        %735 = vmatpush2.msra.mxu0 0.0
        %736 = vmatprep.subr.mxu0 0.0
        %737 = vmatpush2.msra.mxu0 0.0
        %738 = vmatprep.subr.mxu0 0.0
        %739 = vmatpush2.msra.mxu0 0.0
        %740 = vmatprep.subr.mxu0 0.0
        %741 = vmatpush2.msra.mxu0 0.0
        %742 = vmatprep.subr.mxu0 0.0
        %743 = vmatpush2.msra.mxu0 0.0
        %744 = vmatprep.subr.mxu0 0.0
        %745 = vmatpush2.msra.mxu0 0.0
        %746 = vmatprep.subr.mxu0 0.0
        %747 = vmatpush2.msra.mxu0 0.0
        %748 = vmatprep.subr.mxu0 0.0
        %749 = vmatpush2.msra.mxu0 0.0
        %750 = vmatprep.subr.mxu0 0.0
        %751 = vmatpush2.msra.mxu0 0.0
        %752 = vmatprep.mubr.f32.mxu0 0.0
        %753 = vmatmul.mubr.f32.gmra.mxu0 %v683
        %v754 = vpop.f32.mrf.mxu0
        %v755 = vadd.f32 %v674, %v754
        %v756 = vpop.f32.mrf.mxu0
        %v757 = vadd.f32 %v674, %v756
        %758 = vmatprep.mubr.f32.mxu0 0.0
        %759 = vmatmul.mubr.f32.gmra.mxu0 %v686
        %v760 = vpop.f32.mrf.mxu0
        %v761 = vadd.f32 %v679, %v760
        %v762 = vpop.f32.mrf.mxu0
        %v763 = vadd.f32 %v679, %v762
        %764 = vdwg.mxu0
        %765 = vmatprep.subr.mxu0 0.0
        %766 = vmatpush1.msra.mxu0 0.0
        %767 = vmatprep.subr.mxu0 0.0
        %768 = vmatpush1.msra.mxu0 0.0
        %769 = vmatprep.subr.mxu0 0.0
        %770 = vmatpush1.msra.mxu0 0.0
        %771 = vmatprep.subr.mxu0 0.0
        %772 = vmatpush1.msra.mxu0 0.0
        %773 = vmatprep.subr.mxu0 0.0
        %774 = vmatpush1.msra.mxu0 0.0
        %775 = vmatprep.subr.mxu0 0.0
        %776 = vmatpush1.msra.mxu0 0.0
        %777 = vmatprep.subr.mxu0 0.0
        %778 = vmatpush1.msra.mxu0 0.0
        %779 = vmatprep.subr.mxu0 0.0
        %780 = vmatpush1.msra.mxu0 0.0
        %781 = vmatprep.subr.mxu0 0.0
        %782 = vmatpush1.msra.mxu0 0.0
        %783 = vmatprep.subr.mxu0 0.0
        %784 = vmatpush1.msra.mxu0 0.0
        %785 = vmatprep.subr.mxu0 0.0
        %786 = vmatpush1.msra.mxu0 0.0
        %787 = vmatprep.subr.mxu0 0.0
        %788 = vmatpush1.msra.mxu0 0.0
        %789 = vmatprep.subr.mxu0 %v663
        %790 = vmatpush1.msra.mxu0 %v662
        %791 = vmatprep.subr.mxu0 %v656
        %792 = vmatpush1.msra.mxu0 %v655
        %793 = vmatprep.subr.mxu0 %v640
        %794 = vmatpush1.msra.mxu0 %v639
        %795 = vmatprep.subr.mxu0 %v616
        %796 = vmatpush1.msra.mxu0 %v615
        %797 = vmatprep.subr.mxu0 0.0
        %798 = vmatpush2.msra.mxu0 0.0
        %799 = vmatprep.subr.mxu0 0.0
        %800 = vmatpush2.msra.mxu0 0.0
        %801 = vmatprep.subr.mxu0 0.0
        %802 = vmatpush2.msra.mxu0 0.0
        %803 = vmatprep.subr.mxu0 0.0
        %804 = vmatpush2.msra.mxu0 0.0
        %805 = vmatprep.subr.mxu0 0.0
        %806 = vmatpush2.msra.mxu0 0.0
        %807 = vmatprep.subr.mxu0 0.0
        %808 = vmatpush2.msra.mxu0 0.0
        %809 = vmatprep.subr.mxu0 0.0
        %810 = vmatpush2.msra.mxu0 0.0
        %811 = vmatprep.subr.mxu0 0.0
        %812 = vmatpush2.msra.mxu0 0.0
        %813 = vmatprep.subr.mxu0 0.0
        %814 = vmatpush2.msra.mxu0 0.0
        %815 = vmatprep.subr.mxu0 0.0
        %816 = vmatpush2.msra.mxu0 0.0
        %817 = vmatprep.subr.mxu0 0.0
        %818 = vmatpush2.msra.mxu0 0.0
        %819 = vmatprep.subr.mxu0 0.0
        %820 = vmatpush2.msra.mxu0 0.0
        %821 = vmatprep.subr.mxu0 0.0
        %822 = vmatpush2.msra.mxu0 0.0
        %823 = vmatprep.subr.mxu0 0.0
        %824 = vmatpush2.msra.mxu0 0.0
        %825 = vmatprep.subr.mxu0 0.0
        %826 = vmatpush2.msra.mxu0 0.0
        %827 = vmatprep.subr.mxu0 0.0
        %828 = vmatpush2.msra.mxu0 0.0
        %829 = vmatprep.mubr.f32.mxu0 0.0
        %830 = vmatmul.mubr.f32.gmra.mxu0 %v683
        %v831 = vpop.f32.mrf.mxu0
        %v832 = vadd.f32 %v674, %v831
        %v833 = vpop.f32.mrf.mxu0
        %v834 = vadd.f32 %v674, %v833
        %835 = vmatprep.mubr.f32.mxu0 0.0
        %836 = vmatmul.mubr.f32.gmra.mxu0 %v686
        %v837 = vpop.f32.mrf.mxu0
        %v838 = vadd.f32 %v679, %v837
        %v839 = vpop.f32.mrf.mxu0
        %v840 = vadd.f32 %v679, %v839
        %841 = vdwg.mxu0
        %842 = vmatprep.subr.mxu0 0.0
        %843 = vmatpush1.msra.mxu0 0.0
        %844 = vmatprep.subr.mxu0 0.0
        %845 = vmatpush1.msra.mxu0 0.0
        %846 = vmatprep.subr.mxu0 0.0
        %847 = vmatpush1.msra.mxu0 0.0
        %848 = vmatprep.subr.mxu0 0.0
        %849 = vmatpush1.msra.mxu0 0.0
        %850 = vmatprep.subr.mxu0 0.0
        %851 = vmatpush1.msra.mxu0 0.0
        %852 = vmatprep.subr.mxu0 0.0
        %853 = vmatpush1.msra.mxu0 0.0
        %854 = vmatprep.subr.mxu0 0.0
        %855 = vmatpush1.msra.mxu0 0.0
        %856 = vmatprep.subr.mxu0 0.0
        %857 = vmatpush1.msra.mxu0 0.0
        %858 = vmatprep.subr.mxu0 0.0
        %859 = vmatpush1.msra.mxu0 0.0
        %860 = vmatprep.subr.mxu0 0.0
        %861 = vmatpush1.msra.mxu0 0.0
        %862 = vmatprep.subr.mxu0 0.0
        %863 = vmatpush1.msra.mxu0 0.0
        %864 = vmatprep.subr.mxu0 0.0
        %865 = vmatpush1.msra.mxu0 0.0
        %866 = vmatprep.subr.mxu0 %v665
        %867 = vmatpush1.msra.mxu0 %v664
        %868 = vmatprep.subr.mxu0 %v658
        %869 = vmatpush1.msra.mxu0 %v657
        %870 = vmatprep.subr.mxu0 %v642
        %871 = vmatpush1.msra.mxu0 %v641
        %872 = vmatprep.subr.mxu0 %v618
        %873 = vmatpush1.msra.mxu0 %v617
        %874 = vmatprep.subr.mxu0 0.0
        %875 = vmatpush2.msra.mxu0 0.0
        %876 = vmatprep.subr.mxu0 0.0
        %877 = vmatpush2.msra.mxu0 0.0
        %878 = vmatprep.subr.mxu0 0.0
        %879 = vmatpush2.msra.mxu0 0.0
        %880 = vmatprep.subr.mxu0 0.0
        %881 = vmatpush2.msra.mxu0 0.0
        %882 = vmatprep.subr.mxu0 0.0
        %883 = vmatpush2.msra.mxu0 0.0
        %884 = vmatprep.subr.mxu0 0.0
        %885 = vmatpush2.msra.mxu0 0.0
        %886 = vmatprep.subr.mxu0 0.0
        %887 = vmatpush2.msra.mxu0 0.0
        %888 = vmatprep.subr.mxu0 0.0
        %889 = vmatpush2.msra.mxu0 0.0
        %890 = vmatprep.subr.mxu0 0.0
        %891 = vmatpush2.msra.mxu0 0.0
        %892 = vmatprep.subr.mxu0 0.0
        %893 = vmatpush2.msra.mxu0 0.0
        %894 = vmatprep.subr.mxu0 0.0
        %895 = vmatpush2.msra.mxu0 0.0
        %896 = vmatprep.subr.mxu0 0.0
        %897 = vmatpush2.msra.mxu0 0.0
        %898 = vmatprep.subr.mxu0 0.0
        %899 = vmatpush2.msra.mxu0 0.0
        %900 = vmatprep.subr.mxu0 0.0
        %901 = vmatpush2.msra.mxu0 0.0
        %902 = vmatprep.subr.mxu0 0.0
        %903 = vmatpush2.msra.mxu0 0.0
        %904 = vmatprep.subr.mxu0 0.0
        %905 = vmatpush2.msra.mxu0 0.0
        %906 = vmatprep.mubr.f32.mxu0 0.0
        %907 = vmatmul.mubr.f32.gmra.mxu0 %v683
        %v908 = vpop.f32.mrf.mxu0
        %v909 = vadd.f32 %v674, %v908
        %v910 = vpop.f32.mrf.mxu0
        %v911 = vadd.f32 %v674, %v910
        %912 = vmatprep.mubr.f32.mxu0 0.0
        %913 = vmatmul.mubr.f32.gmra.mxu0 %v686
        %v914 = vpop.f32.mrf.mxu0
        %v915 = vadd.f32 %v679, %v914
        %v916 = vpop.f32.mrf.mxu0
        %v917 = vadd.f32 %v679, %v916
        %918 = vdwg.mxu0
        %919 = vmatprep.subr.mxu0 0.0
        %920 = vmatpush1.msra.mxu0 0.0
        %921 = vmatprep.subr.mxu0 0.0
        %922 = vmatpush1.msra.mxu0 0.0
        %923 = vmatprep.subr.mxu0 0.0
        %924 = vmatpush1.msra.mxu0 0.0
        %925 = vmatprep.subr.mxu0 0.0
        %926 = vmatpush1.msra.mxu0 0.0
        %927 = vmatprep.subr.mxu0 0.0
        %928 = vmatpush1.msra.mxu0 0.0
        %929 = vmatprep.subr.mxu0 0.0
        %930 = vmatpush1.msra.mxu0 0.0
        %931 = vmatprep.subr.mxu0 0.0
        %932 = vmatpush1.msra.mxu0 0.0
        %933 = vmatprep.subr.mxu0 0.0
        %934 = vmatpush1.msra.mxu0 0.0
        %935 = vmatprep.subr.mxu0 0.0
        %936 = vmatpush1.msra.mxu0 0.0
        %937 = vmatprep.subr.mxu0 0.0
        %938 = vmatpush1.msra.mxu0 0.0
        %939 = vmatprep.subr.mxu0 0.0
        %940 = vmatpush1.msra.mxu0 0.0
        %941 = vmatprep.subr.mxu0 0.0
        %942 = vmatpush1.msra.mxu0 0.0
        %943 = vmatprep.subr.mxu0 0.0
        %944 = vmatpush1.msra.mxu0 %v666
        %945 = vmatprep.subr.mxu0 0.0
        %946 = vmatpush1.msra.mxu0 %v659
        %947 = vmatprep.subr.mxu0 0.0
        %948 = vmatpush1.msra.mxu0 %v643
        %949 = vmatprep.subr.mxu0 0.0
        %950 = vmatpush1.msra.mxu0 %v619
        %951 = vmatprep.subr.mxu0 0.0
        %952 = vmatpush2.msra.mxu0 0.0
        %953 = vmatprep.subr.mxu0 0.0
        %954 = vmatpush2.msra.mxu0 0.0
        %955 = vmatprep.subr.mxu0 0.0
        %956 = vmatpush2.msra.mxu0 0.0
        %957 = vmatprep.subr.mxu0 0.0
        %958 = vmatpush2.msra.mxu0 0.0
        %959 = vmatprep.subr.mxu0 0.0
        %960 = vmatpush2.msra.mxu0 0.0
        %961 = vmatprep.subr.mxu0 0.0
        %962 = vmatpush2.msra.mxu0 0.0
        %963 = vmatprep.subr.mxu0 0.0
        %964 = vmatpush2.msra.mxu0 0.0
        %965 = vmatprep.subr.mxu0 0.0
        %966 = vmatpush2.msra.mxu0 0.0
        %967 = vmatprep.subr.mxu0 0.0
        %968 = vmatpush2.msra.mxu0 0.0
        %969 = vmatprep.subr.mxu0 0.0
        %970 = vmatpush2.msra.mxu0 0.0
        %971 = vmatprep.subr.mxu0 0.0
        %972 = vmatpush2.msra.mxu0 0.0
        %973 = vmatprep.subr.mxu0 0.0
        %974 = vmatpush2.msra.mxu0 0.0
        %975 = vmatprep.subr.mxu0 0.0
        %976 = vmatpush2.msra.mxu0 0.0
        %977 = vmatprep.subr.mxu0 0.0
        %978 = vmatpush2.msra.mxu0 0.0
        %979 = vmatprep.subr.mxu0 0.0
        %980 = vmatpush2.msra.mxu0 0.0
        %981 = vmatprep.subr.mxu0 0.0
        %982 = vmatpush2.msra.mxu0 0.0
        %983 = vmatprep.mubr.f32.mxu0 0.0
        %984 = vmatmul.mubr.f32.gmra.mxu0 %v683
        %v985 = vpop.f32.mrf.mxu0
        %v986 = vadd.f32 %v674, %v985
        %v987 = vpop.f32.mrf.mxu0
        %988 = vmatprep.mubr.f32.mxu0 0.0
        %989 = vmatmul.mubr.f32.gmra.mxu0 %v686
        %v990 = vpop.f32.mrf.mxu0
        %v991 = vadd.f32 %v679, %v990
        %v992 = vpop.f32.mrf.mxu0
        %993 = vdwg.mxu0
        %v994 = vmax.f32 %v755, 0.0
        %v995 = vmax.f32 %v757, 0.0
        %v996 = vmax.f32 %v832, 0.0
        %v997 = vmax.f32 %v834, 0.0
        %v998 = vmax.f32 %v909, 0.0
        %v999 = vmax.f32 %v911, 0.0
        %v1000 = vmax.f32 %v986, 0.0
        %v1001 = vmax.f32 %v761, 0.0
        %v1002 = vmax.f32 %v763, 0.0
        %v1003 = vmax.f32 %v838, 0.0
        %v1004 = vmax.f32 %v840, 0.0
        %v1005 = vmax.f32 %v915, 0.0
        %v1006 = vmax.f32 %v917, 0.0
        %v1007 = vmax.f32 %v991, 0.0
        %1022 = vrot.lane.b32.xlu0 %v994, 127
        %v1023 = vpop.permute.xlu0 %1022
        %1024 = vrot.lane.b32.xlu0 %v995, 127
        %v1025 = vpop.permute.xlu0 %1024
        %1026 = vrot.lane.b32.xlu0 %v996, 127
        %v1027 = vpop.permute.xlu0 %1026
        %1028 = vrot.lane.b32.xlu0 %v997, 127
        %v1029 = vpop.permute.xlu0 %1028
        %1030 = vrot.lane.b32.xlu0 %v998, 127
        %v1031 = vpop.permute.xlu0 %1030
        %1032 = vrot.lane.b32.xlu0 %v999, 127
        %v1033 = vpop.permute.xlu0 %1032
        %1034 = vrot.lane.b32.xlu0 %v1000, 127
        %v1035 = vpop.permute.xlu0 %1034
        %1036 = vrot.lane.b32.xlu0 %v1001, 127
        %v1037 = vpop.permute.xlu0 %1036
        %1038 = vrot.lane.b32.xlu0 %v1002, 127
        %v1039 = vpop.permute.xlu0 %1038
        %1040 = vrot.lane.b32.xlu0 %v1003, 127
        %v1041 = vpop.permute.xlu0 %1040
        %1042 = vrot.lane.b32.xlu0 %v1004, 127
        %v1043 = vpop.permute.xlu0 %1042
        %1044 = vrot.lane.b32.xlu0 %v1005, 127
        %v1045 = vpop.permute.xlu0 %1044
        %1046 = vrot.lane.b32.xlu0 %v1006, 127
        %v1047 = vpop.permute.xlu0 %1046
        %1048 = vrot.lane.b32.xlu0 %v1007, 127
        %v1049 = vpop.permute.xlu0 %1048
        %v1050 = vsel %vm328, %v1023, %v1025
        %v1051 = vsel %vm328, %v1025, %v1027
        %v1052 = vsel %vm328, %v1027, %v1029
        %v1053 = vsel %vm328, %v1029, %v1031
        %v1054 = vsel %vm328, %v1031, %v1033
        %v1055 = vsel %vm328, %v1033, %v1035
        %v1056 = vsel %vm328, %v1037, %v1039
        %v1057 = vsel %vm328, %v1039, %v1041
        %v1058 = vsel %vm328, %v1041, %v1043
        %v1059 = vsel %vm328, %v1043, %v1045
        %v1060 = vsel %vm328, %v1045, %v1047
        %v1061 = vsel %vm328, %v1047, %v1049
        %v1076 = vmax.f32 %v994, %v1050
        %v1077 = vmax.f32 %v995, %v1051
        %v1078 = vmax.f32 %v996, %v1052
        %v1079 = vmax.f32 %v997, %v1053
        %v1080 = vmax.f32 %v998, %v1054
        %v1081 = vmax.f32 %v999, %v1055
        %v1082 = vmax.f32 %v1000, %v1035
        %v1083 = vmax.f32 %v1001, %v1056
        %v1084 = vmax.f32 %v1002, %v1057
        %v1085 = vmax.f32 %v1003, %v1058
        %v1086 = vmax.f32 %v1004, %v1059
        %v1087 = vmax.f32 %v1005, %v1060
        %v1088 = vmax.f32 %v1006, %v1061
        %v1089 = vmax.f32 %v1007, %v1049
        %1090 = vrot.lane.b32.xlu0 %v994, 126
        %v1091 = vpop.permute.xlu0 %1090
        %1092 = vrot.lane.b32.xlu0 %v995, 126
        %v1093 = vpop.permute.xlu0 %1092
        %1094 = vrot.lane.b32.xlu0 %v996, 126
        %v1095 = vpop.permute.xlu0 %1094
        %1096 = vrot.lane.b32.xlu0 %v997, 126
        %v1097 = vpop.permute.xlu0 %1096
        %1098 = vrot.lane.b32.xlu0 %v998, 126
        %v1099 = vpop.permute.xlu0 %1098
        %1100 = vrot.lane.b32.xlu0 %v999, 126
        %v1101 = vpop.permute.xlu0 %1100
        %1102 = vrot.lane.b32.xlu0 %v1000, 126
        %v1103 = vpop.permute.xlu0 %1102
        %1104 = vrot.lane.b32.xlu0 %v1001, 126
        %v1105 = vpop.permute.xlu0 %1104
        %1106 = vrot.lane.b32.xlu0 %v1002, 126
        %v1107 = vpop.permute.xlu0 %1106
        %1108 = vrot.lane.b32.xlu0 %v1003, 126
        %v1109 = vpop.permute.xlu0 %1108
        %1110 = vrot.lane.b32.xlu0 %v1004, 126
        %v1111 = vpop.permute.xlu0 %1110
        %1112 = vrot.lane.b32.xlu0 %v1005, 126
        %v1113 = vpop.permute.xlu0 %1112
        %1114 = vrot.lane.b32.xlu0 %v1006, 126
        %v1115 = vpop.permute.xlu0 %1114
        %1116 = vrot.lane.b32.xlu0 %v1007, 126
        %v1117 = vpop.permute.xlu0 %1116
        %v1118 = vsel %vm367, %v1091, %v1093
        %v1119 = vsel %vm367, %v1093, %v1095
        %v1120 = vsel %vm367, %v1095, %v1097
        %v1121 = vsel %vm367, %v1097, %v1099
        %v1122 = vsel %vm367, %v1099, %v1101
        %v1123 = vsel %vm367, %v1101, %v1103
        %v1124 = vsel %vm367, %v1105, %v1107
        %v1125 = vsel %vm367, %v1107, %v1109
        %v1126 = vsel %vm367, %v1109, %v1111
        %v1127 = vsel %vm367, %v1111, %v1113
        %v1128 = vsel %vm367, %v1113, %v1115
        %v1129 = vsel %vm367, %v1115, %v1117
        %v1144 = vmax.f32 %v1076, %v1118
        %v1145 = vmax.f32 %v1077, %v1119
        %v1146 = vmax.f32 %v1078, %v1120
        %v1147 = vmax.f32 %v1079, %v1121
        %v1148 = vmax.f32 %v1080, %v1122
        %v1149 = vmax.f32 %v1081, %v1123
        %v1150 = vmax.f32 %v1082, %v1103
        %v1151 = vmax.f32 %v1083, %v1124
        %v1152 = vmax.f32 %v1084, %v1125
        %v1153 = vmax.f32 %v1085, %v1126
        %v1154 = vmax.f32 %v1086, %v1127
        %v1155 = vmax.f32 %v1087, %v1128
        %v1156 = vmax.f32 %v1088, %v1129
        %v1157 = vmax.f32 %v1089, %v1117
        %1158 = vrot.lane.b32.xlu0 %v994, 125
        %v1159 = vpop.permute.xlu0 %1158
        %1160 = vrot.lane.b32.xlu0 %v995, 125
        %v1161 = vpop.permute.xlu0 %1160
        %1162 = vrot.lane.b32.xlu0 %v996, 125
        %v1163 = vpop.permute.xlu0 %1162
        %1164 = vrot.lane.b32.xlu0 %v997, 125
        %v1165 = vpop.permute.xlu0 %1164
        %1166 = vrot.lane.b32.xlu0 %v998, 125
        %v1167 = vpop.permute.xlu0 %1166
        %1168 = vrot.lane.b32.xlu0 %v999, 125
        %v1169 = vpop.permute.xlu0 %1168
        %1170 = vrot.lane.b32.xlu0 %v1000, 125
        %v1171 = vpop.permute.xlu0 %1170
        %1172 = vrot.lane.b32.xlu0 %v1001, 125
        %v1173 = vpop.permute.xlu0 %1172
        %1174 = vrot.lane.b32.xlu0 %v1002, 125
        %v1175 = vpop.permute.xlu0 %1174
        %1176 = vrot.lane.b32.xlu0 %v1003, 125
        %v1177 = vpop.permute.xlu0 %1176
        %1178 = vrot.lane.b32.xlu0 %v1004, 125
        %v1179 = vpop.permute.xlu0 %1178
        %1180 = vrot.lane.b32.xlu0 %v1005, 125
        %v1181 = vpop.permute.xlu0 %1180
        %1182 = vrot.lane.b32.xlu0 %v1006, 125
        %v1183 = vpop.permute.xlu0 %1182
        %1184 = vrot.lane.b32.xlu0 %v1007, 125
        %v1185 = vpop.permute.xlu0 %1184
        %vm1186 = vcmask 1022976
        %v1187 = vsel %vm1186, %v1159, %v1161
        %v1188 = vsel %vm1186, %v1161, %v1163
        %v1189 = vsel %vm1186, %v1163, %v1165
        %v1190 = vsel %vm1186, %v1165, %v1167
        %v1191 = vsel %vm1186, %v1167, %v1169
        %v1192 = vsel %vm1186, %v1169, %v1171
        %v1193 = vsel %vm1186, %v1173, %v1175
        %v1194 = vsel %vm1186, %v1175, %v1177
        %v1195 = vsel %vm1186, %v1177, %v1179
        %v1196 = vsel %vm1186, %v1179, %v1181
        %v1197 = vsel %vm1186, %v1181, %v1183
        %v1198 = vsel %vm1186, %v1183, %v1185
        %v1213 = vmax.f32 %v1144, %v1187
        %v1214 = vmax.f32 %v1145, %v1188
        %v1215 = vmax.f32 %v1146, %v1189
        %v1216 = vmax.f32 %v1147, %v1190
        %v1217 = vmax.f32 %v1148, %v1191
        %v1218 = vmax.f32 %v1149, %v1192
        %v1219 = vmax.f32 %v1150, %v1171
        %v1220 = vmax.f32 %v1151, %v1193
        %v1221 = vmax.f32 %v1152, %v1194
        %v1222 = vmax.f32 %v1153, %v1195
        %v1223 = vmax.f32 %v1154, %v1196
        %v1224 = vmax.f32 %v1155, %v1197
        %v1225 = vmax.f32 %v1156, %v1198
        %v1226 = vmax.f32 %v1157, %v1185
        %1241 = vrot.lane.b32.xlu0 %v1213, 98
        %v1242 = vpop.permute.xlu0 %1241
        %1243 = vrot.lane.b32.xlu0 %v1214, 98
        %v1244 = vpop.permute.xlu0 %1243
        %1245 = vrot.lane.b32.xlu0 %v1215, 98
        %v1246 = vpop.permute.xlu0 %1245
        %1247 = vrot.lane.b32.xlu0 %v1216, 98
        %v1248 = vpop.permute.xlu0 %1247
        %1249 = vrot.lane.b32.xlu0 %v1217, 98
        %v1250 = vpop.permute.xlu0 %1249
        %1251 = vrot.lane.b32.xlu0 %v1218, 98
        %v1252 = vpop.permute.xlu0 %1251
        %1253 = vrot.lane.b32.xlu0 %v1219, 98
        %v1254 = vpop.permute.xlu0 %1253
        %1255 = vrot.lane.b32.xlu0 %v1220, 98
        %v1256 = vpop.permute.xlu0 %1255
        %1257 = vrot.lane.b32.xlu0 %v1221, 98
        %v1258 = vpop.permute.xlu0 %1257
        %1259 = vrot.lane.b32.xlu0 %v1222, 98
        %v1260 = vpop.permute.xlu0 %1259
        %1261 = vrot.lane.b32.xlu0 %v1223, 98
        %v1262 = vpop.permute.xlu0 %1261
        %1263 = vrot.lane.b32.xlu0 %v1224, 98
        %v1264 = vpop.permute.xlu0 %1263
        %1265 = vrot.lane.b32.xlu0 %v1225, 98
        %v1266 = vpop.permute.xlu0 %1265
        %1267 = vrot.lane.b32.xlu0 %v1226, 98
        %v1268 = vpop.permute.xlu0 %1267
        %v1269 = vsel %vm406, %v1242, %v1244
        %v1270 = vsel %vm406, %v1244, %v1246
        %v1271 = vsel %vm406, %v1246, %v1248
        %v1272 = vsel %vm406, %v1248, %v1250
        %v1273 = vsel %vm406, %v1250, %v1252
        %v1274 = vsel %vm406, %v1252, %v1254
        %v1275 = vsel %vm406, %v1256, %v1258
        %v1276 = vsel %vm406, %v1258, %v1260
        %v1277 = vsel %vm406, %v1260, %v1262
        %v1278 = vsel %vm406, %v1262, %v1264
        %v1279 = vsel %vm406, %v1264, %v1266
        %v1280 = vsel %vm406, %v1266, %v1268
        %v1293 = vmax.f32 %v1213, %v1269
        %v1294 = vmax.f32 %v1214, %v1270
        %v1295 = vmax.f32 %v1215, %v1271
        %v1296 = vmax.f32 %v1216, %v1272
        %v1297 = vmax.f32 %v1217, %v1273
        %v1298 = vmax.f32 %v1218, %v1274
        %v1299 = vmax.f32 %v1220, %v1275
        %v1300 = vmax.f32 %v1221, %v1276
        %v1301 = vmax.f32 %v1222, %v1277
        %v1302 = vmax.f32 %v1223, %v1278
        %v1303 = vmax.f32 %v1224, %v1279
        %v1304 = vmax.f32 %v1225, %v1280
        %1305 = vrot.lane.b32.xlu0 %v1213, 68
        %v1306 = vpop.permute.xlu0 %1305
        %1307 = vrot.lane.b32.xlu0 %v1214, 68
        %v1308 = vpop.permute.xlu0 %1307
        %1309 = vrot.lane.b32.xlu0 %v1215, 68
        %v1310 = vpop.permute.xlu0 %1309
        %1311 = vrot.lane.b32.xlu0 %v1216, 68
        %v1312 = vpop.permute.xlu0 %1311
        %1313 = vrot.lane.b32.xlu0 %v1217, 68
        %v1314 = vpop.permute.xlu0 %1313
        %1315 = vrot.lane.b32.xlu0 %v1218, 68
        %v1316 = vpop.permute.xlu0 %1315
        %1317 = vrot.lane.b32.xlu0 %v1219, 68
        %v1318 = vpop.permute.xlu0 %1317
        %1319 = vrot.lane.b32.xlu0 %v1220, 68
        %v1320 = vpop.permute.xlu0 %1319
        %1321 = vrot.lane.b32.xlu0 %v1221, 68
        %v1322 = vpop.permute.xlu0 %1321
        %1323 = vrot.lane.b32.xlu0 %v1222, 68
        %v1324 = vpop.permute.xlu0 %1323
        %1325 = vrot.lane.b32.xlu0 %v1223, 68
        %v1326 = vpop.permute.xlu0 %1325
        %1327 = vrot.lane.b32.xlu0 %v1224, 68
        %v1328 = vpop.permute.xlu0 %1327
        %1329 = vrot.lane.b32.xlu0 %v1225, 68
        %v1330 = vpop.permute.xlu0 %1329
        %1331 = vrot.lane.b32.xlu0 %v1226, 68
        %v1332 = vpop.permute.xlu0 %1331
        %v1333 = vsel %vm519, %v1306, %v1308
        %v1334 = vsel %vm519, %v1308, %v1310
        %v1335 = vsel %vm519, %v1310, %v1312
        %v1336 = vsel %vm519, %v1312, %v1314
        %v1337 = vsel %vm519, %v1314, %v1316
        %v1338 = vsel %vm519, %v1316, %v1318
        %v1339 = vsel %vm519, %v1320, %v1322
        %v1340 = vsel %vm519, %v1322, %v1324
        %v1341 = vsel %vm519, %v1324, %v1326
        %v1342 = vsel %vm519, %v1326, %v1328
        %v1343 = vsel %vm519, %v1328, %v1330
        %v1344 = vsel %vm519, %v1330, %v1332
        %v1357 = vmax.f32 %v1293, %v1333
        %v1358 = vmax.f32 %v1294, %v1334
        %v1359 = vmax.f32 %v1295, %v1335
        %v1360 = vmax.f32 %v1296, %v1336
        %v1361 = vmax.f32 %v1297, %v1337
        %v1362 = vmax.f32 %v1298, %v1338
        %v1363 = vmax.f32 %v1299, %v1339
        %v1364 = vmax.f32 %v1300, %v1340
        %v1365 = vmax.f32 %v1301, %v1341
        %v1366 = vmax.f32 %v1302, %v1342
        %v1367 = vmax.f32 %v1303, %v1343
        %v1368 = vmax.f32 %v1304, %v1344
        %1369 = vrot.lane.b32.xlu0 %v1213, 38
        %v1370 = vpop.permute.xlu0 %1369
        %1371 = vrot.lane.b32.xlu0 %v1214, 38
        %v1372 = vpop.permute.xlu0 %1371
        %1373 = vrot.lane.b32.xlu0 %v1215, 38
        %v1374 = vpop.permute.xlu0 %1373
        %1375 = vrot.lane.b32.xlu0 %v1216, 38
        %v1376 = vpop.permute.xlu0 %1375
        %1377 = vrot.lane.b32.xlu0 %v1217, 38
        %v1378 = vpop.permute.xlu0 %1377
        %1379 = vrot.lane.b32.xlu0 %v1218, 38
        %v1380 = vpop.permute.xlu0 %1379
        %1381 = vrot.lane.b32.xlu0 %v1219, 38
        %v1382 = vpop.permute.xlu0 %1381
        %1383 = vrot.lane.b32.xlu0 %v1220, 38
        %v1384 = vpop.permute.xlu0 %1383
        %1385 = vrot.lane.b32.xlu0 %v1221, 38
        %v1386 = vpop.permute.xlu0 %1385
        %1387 = vrot.lane.b32.xlu0 %v1222, 38
        %v1388 = vpop.permute.xlu0 %1387
        %1389 = vrot.lane.b32.xlu0 %v1223, 38
        %v1390 = vpop.permute.xlu0 %1389
        %1391 = vrot.lane.b32.xlu0 %v1224, 38
        %v1392 = vpop.permute.xlu0 %1391
        %1393 = vrot.lane.b32.xlu0 %v1225, 38
        %v1394 = vpop.permute.xlu0 %1393
        %1395 = vrot.lane.b32.xlu0 %v1226, 38
        %v1396 = vpop.permute.xlu0 %1395
        %vm1397 = vcmask 310272
        %v1398 = vsel %vm1397, %v1370, %v1372
        %v1399 = vsel %vm1397, %v1372, %v1374
        %v1400 = vsel %vm1397, %v1374, %v1376
        %v1401 = vsel %vm1397, %v1376, %v1378
        %v1402 = vsel %vm1397, %v1378, %v1380
        %v1403 = vsel %vm1397, %v1380, %v1382
        %v1404 = vsel %vm1397, %v1384, %v1386
        %v1405 = vsel %vm1397, %v1386, %v1388
        %v1406 = vsel %vm1397, %v1388, %v1390
        %v1407 = vsel %vm1397, %v1390, %v1392
        %v1408 = vsel %vm1397, %v1392, %v1394
        %v1409 = vsel %vm1397, %v1394, %v1396
        %v1422 = vmax.f32 %v1357, %v1398
        %v1423 = vmax.f32 %v1358, %v1399
        %v1424 = vmax.f32 %v1359, %v1400
        %v1425 = vmax.f32 %v1360, %v1401
        %v1426 = vmax.f32 %v1361, %v1402
        %v1427 = vmax.f32 %v1362, %v1403
        %v1428 = vmax.f32 %v1363, %v1404
        %v1429 = vmax.f32 %v1364, %v1405
        %v1430 = vmax.f32 %v1365, %v1406
        %v1431 = vmax.f32 %v1366, %v1407
        %v1432 = vmax.f32 %v1367, %v1408
        %v1433 = vmax.f32 %v1368, %v1409
        %v1434 = vld [vmem:[%s3] sm:$0xff]
        %v1435 = vld [vmem:[%s3 + $0x8] sm:$0xff]
        %v1436 = vld [vmem:[%s3 + $0x10] sm:$0xff]
        %v1437 = vld [vmem:[%s3 + $0x18] sm:$0xff]
        %v1438 = vld [vmem:[%s3 + $0x20] sm:$0xff]
        %v1439 = vld [vmem:[%s3 + $0x28] sm:$0xff]
        %v1440 = vld [vmem:[%s3 + $0x30] sm:$0xff]
        %v1441 = vld [vmem:[%s3 + $0x38] sm:$0xff]
        %v1442 = vld [vmem:[%s3 + $0x40] sm:$0xff]
        %v1443 = vld [vmem:[%s3 + $0x48] sm:$0xff]
        %v1444 = vld [vmem:[%s3 + $0x50] sm:$0xff]
        %v1445 = vld [vmem:[%s3 + $0x58] sm:$0xff]
        %v1446 = vld [vmem:[%s3 + $0x60] sm:$0xff]
        %v1447 = vld [vmem:[%s3 + $0x68] sm:$0xff]
        %v1448 = vld [vmem:[%s3 + $0x70] sm:$0xff]
        %v1449 = vld [vmem:[%s3 + $0x78] sm:$0xff]
        %v1450 = vld [vmem:[%s3 + $0x80] sm:$0xff]
        %v1451 = vld [vmem:[%s3 + $0x88] sm:$0xff]
        %v1452 = vld [vmem:[%s3 + $0x90] sm:$0xff]
        %v1453 = vld [vmem:[%s3 + $0x98] sm:$0xff]
        %v1454 = vld [vmem:[%s3 + $0xa0] sm:$0xff]
        %v1455 = vld [vmem:[%s3 + $0xa8] sm:$0xff]
        %v1456 = vld [vmem:[%s3 + $0xb0] sm:$0xff]
        %v1457 = vld [vmem:[%s3 + $0xb8] sm:$0xff]
        %v1458 = vld [vmem:[%s3 + $0xc0] sm:$0xff]
        %v1459 = vld [vmem:[%s3 + $0xc8] sm:$0xff]
        %v1460 = vld [vmem:[%s3 + $0xd0] sm:$0xff]
        %v1461 = vld [vmem:[%s3 + $0xd8] sm:$0xff]
        %v1462 = vld [vmem:[%s3 + $0xe0] sm:$0xff]
        %v1463 = vld [vmem:[%s3 + $0xe8] sm:$0xff]
        %v1464 = vld [vmem:[%s3 + $0xf0] sm:$0xff]
        %v1465 = vld [vmem:[%s3 + $0xf8] sm:$0xff]
        %v1466 = vld [vmem:[%s3 + $0x100] sm:$0xff]
        %v1467 = vld [vmem:[%s3 + $0x108] sm:$0xff]
        %v1468 = vld [vmem:[%s3 + $0x110] sm:$0xff]
        %v1469 = vld [vmem:[%s3 + $0x118] sm:$0xff]
        %v1470 = vld [vmem:[%s3 + $0x120] sm:$0xff]
        %v1471 = vld [vmem:[%s3 + $0x128] sm:$0xff]
        %v1472 = vld [vmem:[%s3 + $0x130] sm:$0xff]
        %v1473 = vld [vmem:[%s3 + $0x138] sm:$0xff]
        %v1474 = vld [vmem:[%s3 + $0x140] sm:$0xff]
        %v1475 = vld [vmem:[%s3 + $0x148] sm:$0xff]
        %v1476 = vld [vmem:[%s3 + $0x150] sm:$0xff]
        %v1477 = vld [vmem:[%s3 + $0x158] sm:$0xff]
        %v1478 = vld [vmem:[%s3 + $0x160] sm:$0xff]
        %v1479 = vld [vmem:[%s3 + $0x168] sm:$0xff]
        %v1480 = vld [vmem:[%s3 + $0x170] sm:$0xff]
        %v1481 = vld [vmem:[%s3 + $0x178] sm:$0xff]
        %v1482 = vld [vmem:[%s3 + $0x180] sm:$0xff]
        %v1483 = vld [vmem:[%s3 + $0x188] sm:$0xff]
        %v1484 = vld [vmem:[%s3 + $0x190] sm:$0xff]
        %v1485 = vld [vmem:[%s3 + $0x198] sm:$0xff]
        %v1486 = vld [vmem:[%s3 + $0x1a0] sm:$0xff]
        %v1487 = vld [vmem:[%s3 + $0x1a8] sm:$0xff]
        %v1488 = vld [vmem:[%s3 + $0x1b0] sm:$0xff]
        %v1489 = vld [vmem:[%s3 + $0x1b8] sm:$0xff]
        %v1490 = vld [vmem:[%s3 + $0x1c0] sm:$0xff]
        %v1491 = vld [vmem:[%s3 + $0x1c8] sm:$0xff]
        %v1492 = vld [vmem:[%s3 + $0x1d0] sm:$0xff]
        %v1493 = vld [vmem:[%s3 + $0x1d8] sm:$0xff]
        %v1494 = vld [vmem:[%s3 + $0x1e0] sm:$0xff]
        %v1495 = vld [vmem:[%s3 + $0x1e8] sm:$0xff]
        %v1496 = vld [vmem:[%s3 + $0x1f0] sm:$0xff]
        %v1497 = vld [vmem:[%s3 + $0x1f8] sm:$0xff]
        %v1498 = vld [vmem:[%s3 + $0x200] sm:$0xff]
        %v1499 = vld [vmem:[%s3 + $0x208] sm:$0xff]
        %v1500 = vld [vmem:[%s3 + $0x210] sm:$0xff]
        %v1501 = vld [vmem:[%s3 + $0x218] sm:$0xff]
        %v1502 = vld [vmem:[%s3 + $0x220] sm:$0xff]
        %v1503 = vld [vmem:[%s3 + $0x228] sm:$0xff]
        %v1504 = vld [vmem:[%s3 + $0x230] sm:$0xff]
        %v1505 = vld [vmem:[%s3 + $0x238] sm:$0xff]
        %v1506 = vld [vmem:[%s3 + $0x240] sm:$0xff]
        %v1507 = vld [vmem:[%s3 + $0x248] sm:$0xff]
        %v1508 = vld [vmem:[%s3 + $0x250] sm:$0xff]
        %v1509 = vld [vmem:[%s3 + $0x258] sm:$0xff]
        %v1510 = vld [vmem:[%s3 + $0x260] sm:$0xff]
        %v1511 = vld [vmem:[%s3 + $0x268] sm:$0xff]
        %v1512 = vld [vmem:[%s3 + $0x270] sm:$0xff]
        %v1513 = vld [vmem:[%s3 + $0x278] sm:$0xff]
        %v1514 = vld [vmem:[%s3 + $0x280] sm:$0xff]
        %v1515 = vld [vmem:[%s3 + $0x288] sm:$0xff]
        %v1516 = vld [vmem:[%s3 + $0x290] sm:$0xff]
        %v1517 = vld [vmem:[%s3 + $0x298] sm:$0xff]
        %v1518 = vld [vmem:[%s3 + $0x2a0] sm:$0xff]
        %v1519 = vld [vmem:[%s3 + $0x2a8] sm:$0xff]
        %v1520 = vld [vmem:[%s3 + $0x2b0] sm:$0xff]
        %v1521 = vld [vmem:[%s3 + $0x2b8] sm:$0xff]
        %v1522 = vld [vmem:[%s3 + $0x2c0] sm:$0xff]
        %v1523 = vld [vmem:[%s3 + $0x2c8] sm:$0xff]
        %v1524 = vld [vmem:[%s3 + $0x2d0] sm:$0xff]
        %v1525 = vld [vmem:[%s3 + $0x2d8] sm:$0xff]
        %v1526 = vld [vmem:[%s3 + $0x2e0] sm:$0xff]
        %v1527 = vld [vmem:[%s3 + $0x2e8] sm:$0xff]
        %v1528 = vld [vmem:[%s3 + $0x2f0] sm:$0xff]
        %v1529 = vld [vmem:[%s3 + $0x2f8] sm:$0xff]
        %1530 = vmatprep.subr.mxu0 0.0
        %1531 = vmatpush1.msra.mxu0 %v1449
        %1532 = vmatprep.subr.mxu0 0.0
        %1533 = vmatpush1.msra.mxu0 %v1448
        %1534 = vmatprep.subr.mxu0 0.0
        %1535 = vmatpush1.msra.mxu0 %v1447
        %1536 = vmatprep.subr.mxu0 0.0
        %1537 = vmatpush1.msra.mxu0 %v1446
        %1538 = vmatprep.subr.mxu0 0.0
        %1539 = vmatpush1.msra.mxu0 %v1445
        %1540 = vmatprep.subr.mxu0 0.0
        %1541 = vmatpush1.msra.mxu0 %v1444
        %1542 = vmatprep.subr.mxu0 0.0
        %1543 = vmatpush1.msra.mxu0 %v1443
        %1544 = vmatprep.subr.mxu0 0.0
        %1545 = vmatpush1.msra.mxu0 %v1442
        %1546 = vmatprep.subr.mxu0 0.0
        %1547 = vmatpush1.msra.mxu0 %v1441
        %1548 = vmatprep.subr.mxu0 0.0
        %1549 = vmatpush1.msra.mxu0 %v1440
        %1550 = vmatprep.subr.mxu0 0.0
        %1551 = vmatpush1.msra.mxu0 %v1439
        %1552 = vmatprep.subr.mxu0 0.0
        %1553 = vmatpush1.msra.mxu0 %v1438
        %1554 = vmatprep.subr.mxu0 0.0
        %1555 = vmatpush1.msra.mxu0 %v1437
        %1556 = vmatprep.subr.mxu0 0.0
        %1557 = vmatpush1.msra.mxu0 %v1436
        %1558 = vmatprep.subr.mxu0 0.0
        %1559 = vmatpush1.msra.mxu0 %v1435
        %1560 = vmatprep.subr.mxu0 0.0
        %1561 = vmatpush1.msra.mxu0 %v1434
        %1562 = vmatprep.subr.mxu0 0.0
        %1563 = vmatpush2.msra.mxu0 %v1465
        %1564 = vmatprep.subr.mxu0 0.0
        %1565 = vmatpush2.msra.mxu0 %v1464
        %1566 = vmatprep.subr.mxu0 0.0
        %1567 = vmatpush2.msra.mxu0 %v1463
        %1568 = vmatprep.subr.mxu0 0.0
        %1569 = vmatpush2.msra.mxu0 %v1462
        %1570 = vmatprep.subr.mxu0 0.0
        %1571 = vmatpush2.msra.mxu0 %v1461
        %1572 = vmatprep.subr.mxu0 0.0
        %1573 = vmatpush2.msra.mxu0 %v1460
        %1574 = vmatprep.subr.mxu0 0.0
        %1575 = vmatpush2.msra.mxu0 %v1459
        %1576 = vmatprep.subr.mxu0 0.0
        %1577 = vmatpush2.msra.mxu0 %v1458
        %1578 = vmatprep.subr.mxu0 0.0
        %1579 = vmatpush2.msra.mxu0 %v1457
        %1580 = vmatprep.subr.mxu0 0.0
        %1581 = vmatpush2.msra.mxu0 %v1456
        %1582 = vmatprep.subr.mxu0 0.0
        %1583 = vmatpush2.msra.mxu0 %v1455
        %1584 = vmatprep.subr.mxu0 0.0
        %1585 = vmatpush2.msra.mxu0 %v1454
        %1586 = vmatprep.subr.mxu0 0.0
        %1587 = vmatpush2.msra.mxu0 %v1453
        %1588 = vmatprep.subr.mxu0 0.0
        %1589 = vmatpush2.msra.mxu0 %v1452
        %1590 = vmatprep.subr.mxu0 0.0
        %1591 = vmatpush2.msra.mxu0 %v1451
        %1592 = vmatprep.subr.mxu0 0.0
        %1593 = vmatpush2.msra.mxu0 %v1450
        %1594 = vmatprep.mubr.f32.mxu0 %v1423
        %1595 = vmatmul.mubr.f32.gmra.mxu0 %v1422
        %v1596 = vpop.f32.mrf.mxu0
        %v1597 = vadd.f32 0.0, %v1596
        %v1598 = vpop.f32.mrf.mxu0
        %1599 = vmatprep.mubr.f32.mxu0 %v1429
        %1600 = vmatmul.mubr.f32.gmra.mxu0 %v1428
        %v1601 = vpop.f32.mrf.mxu0
        %v1602 = vadd.f32 0.0, %v1601
        %v1603 = vpop.f32.mrf.mxu0
        %1604 = vdwg.mxu0
        %1605 = vmatprep.subr.mxu0 0.0
        %1606 = vmatpush1.msra.mxu0 %v1481
        %1607 = vmatprep.subr.mxu0 0.0
        %1608 = vmatpush1.msra.mxu0 %v1480
        %1609 = vmatprep.subr.mxu0 0.0
        %1610 = vmatpush1.msra.mxu0 %v1479
        %1611 = vmatprep.subr.mxu0 0.0
        %1612 = vmatpush1.msra.mxu0 %v1478
        %1613 = vmatprep.subr.mxu0 0.0
        %1614 = vmatpush1.msra.mxu0 %v1477
        %1615 = vmatprep.subr.mxu0 0.0
        %1616 = vmatpush1.msra.mxu0 %v1476
        %1617 = vmatprep.subr.mxu0 0.0
        %1618 = vmatpush1.msra.mxu0 %v1475
        %1619 = vmatprep.subr.mxu0 0.0
        %1620 = vmatpush1.msra.mxu0 %v1474
        %1621 = vmatprep.subr.mxu0 0.0
        %1622 = vmatpush1.msra.mxu0 %v1473
        %1623 = vmatprep.subr.mxu0 0.0
        %1624 = vmatpush1.msra.mxu0 %v1472
        %1625 = vmatprep.subr.mxu0 0.0
        %1626 = vmatpush1.msra.mxu0 %v1471
        %1627 = vmatprep.subr.mxu0 0.0
        %1628 = vmatpush1.msra.mxu0 %v1470
        %1629 = vmatprep.subr.mxu0 0.0
        %1630 = vmatpush1.msra.mxu0 %v1469
        %1631 = vmatprep.subr.mxu0 0.0
        %1632 = vmatpush1.msra.mxu0 %v1468
        %1633 = vmatprep.subr.mxu0 0.0
        %1634 = vmatpush1.msra.mxu0 %v1467
        %1635 = vmatprep.subr.mxu0 0.0
        %1636 = vmatpush1.msra.mxu0 %v1466
        %1637 = vmatprep.subr.mxu0 0.0
        %1638 = vmatpush2.msra.mxu0 %v1497
        %1639 = vmatprep.subr.mxu0 0.0
        %1640 = vmatpush2.msra.mxu0 %v1496
        %1641 = vmatprep.subr.mxu0 0.0
        %1642 = vmatpush2.msra.mxu0 %v1495
        %1643 = vmatprep.subr.mxu0 0.0
        %1644 = vmatpush2.msra.mxu0 %v1494
        %1645 = vmatprep.subr.mxu0 0.0
        %1646 = vmatpush2.msra.mxu0 %v1493
        %1647 = vmatprep.subr.mxu0 0.0
        %1648 = vmatpush2.msra.mxu0 %v1492
        %1649 = vmatprep.subr.mxu0 0.0
        %1650 = vmatpush2.msra.mxu0 %v1491
        %1651 = vmatprep.subr.mxu0 0.0
        %1652 = vmatpush2.msra.mxu0 %v1490
        %1653 = vmatprep.subr.mxu0 0.0
        %1654 = vmatpush2.msra.mxu0 %v1489
        %1655 = vmatprep.subr.mxu0 0.0
        %1656 = vmatpush2.msra.mxu0 %v1488
        %1657 = vmatprep.subr.mxu0 0.0
        %1658 = vmatpush2.msra.mxu0 %v1487
        %1659 = vmatprep.subr.mxu0 0.0
        %1660 = vmatpush2.msra.mxu0 %v1486
        %1661 = vmatprep.subr.mxu0 0.0
        %1662 = vmatpush2.msra.mxu0 %v1485
        %1663 = vmatprep.subr.mxu0 0.0
        %1664 = vmatpush2.msra.mxu0 %v1484
        %1665 = vmatprep.subr.mxu0 0.0
        %1666 = vmatpush2.msra.mxu0 %v1483
        %1667 = vmatprep.subr.mxu0 0.0
        %1668 = vmatpush2.msra.mxu0 %v1482
        %1669 = vmatprep.mubr.f32.mxu0 %v1425
        %1670 = vmatmul.mubr.f32.gmra.mxu0 %v1424
        %v1671 = vpop.f32.mrf.mxu0
        %v1672 = vadd.f32 %v1597, %v1671
        %v1673 = vpop.f32.mrf.mxu0
        %1674 = vmatprep.mubr.f32.mxu0 %v1431
        %1675 = vmatmul.mubr.f32.gmra.mxu0 %v1430
        %v1676 = vpop.f32.mrf.mxu0
        %v1677 = vadd.f32 %v1602, %v1676
        %v1678 = vpop.f32.mrf.mxu0
        %1679 = vdwg.mxu0
        %1680 = vmatprep.subr.mxu0 0.0
        %1681 = vmatpush1.msra.mxu0 %v1513
        %1682 = vmatprep.subr.mxu0 0.0
        %1683 = vmatpush1.msra.mxu0 %v1512
        %1684 = vmatprep.subr.mxu0 0.0
        %1685 = vmatpush1.msra.mxu0 %v1511
        %1686 = vmatprep.subr.mxu0 0.0
        %1687 = vmatpush1.msra.mxu0 %v1510
        %1688 = vmatprep.subr.mxu0 0.0
        %1689 = vmatpush1.msra.mxu0 %v1509
        %1690 = vmatprep.subr.mxu0 0.0
        %1691 = vmatpush1.msra.mxu0 %v1508
        %1692 = vmatprep.subr.mxu0 0.0
        %1693 = vmatpush1.msra.mxu0 %v1507
        %1694 = vmatprep.subr.mxu0 0.0
        %1695 = vmatpush1.msra.mxu0 %v1506
        %1696 = vmatprep.subr.mxu0 0.0
        %1697 = vmatpush1.msra.mxu0 %v1505
        %1698 = vmatprep.subr.mxu0 0.0
        %1699 = vmatpush1.msra.mxu0 %v1504
        %1700 = vmatprep.subr.mxu0 0.0
        %1701 = vmatpush1.msra.mxu0 %v1503
        %1702 = vmatprep.subr.mxu0 0.0
        %1703 = vmatpush1.msra.mxu0 %v1502
        %1704 = vmatprep.subr.mxu0 0.0
        %1705 = vmatpush1.msra.mxu0 %v1501
        %1706 = vmatprep.subr.mxu0 0.0
        %1707 = vmatpush1.msra.mxu0 %v1500
        %1708 = vmatprep.subr.mxu0 0.0
        %1709 = vmatpush1.msra.mxu0 %v1499
        %1710 = vmatprep.subr.mxu0 0.0
        %1711 = vmatpush1.msra.mxu0 %v1498
        %1712 = vmatprep.subr.mxu0 0.0
        %1713 = vmatpush2.msra.mxu0 %v1529
        %1714 = vmatprep.subr.mxu0 0.0
        %1715 = vmatpush2.msra.mxu0 %v1528
        %1716 = vmatprep.subr.mxu0 0.0
        %1717 = vmatpush2.msra.mxu0 %v1527
        %1718 = vmatprep.subr.mxu0 0.0
        %1719 = vmatpush2.msra.mxu0 %v1526
        %1720 = vmatprep.subr.mxu0 0.0
        %1721 = vmatpush2.msra.mxu0 %v1525
        %1722 = vmatprep.subr.mxu0 0.0
        %1723 = vmatpush2.msra.mxu0 %v1524
        %1724 = vmatprep.subr.mxu0 0.0
        %1725 = vmatpush2.msra.mxu0 %v1523
        %1726 = vmatprep.subr.mxu0 0.0
        %1727 = vmatpush2.msra.mxu0 %v1522
        %1728 = vmatprep.subr.mxu0 0.0
        %1729 = vmatpush2.msra.mxu0 %v1521
        %1730 = vmatprep.subr.mxu0 0.0
        %1731 = vmatpush2.msra.mxu0 %v1520
        %1732 = vmatprep.subr.mxu0 0.0
        %1733 = vmatpush2.msra.mxu0 %v1519
        %1734 = vmatprep.subr.mxu0 0.0
        %1735 = vmatpush2.msra.mxu0 %v1518
        %1736 = vmatprep.subr.mxu0 0.0
        %1737 = vmatpush2.msra.mxu0 %v1517
        %1738 = vmatprep.subr.mxu0 0.0
        %1739 = vmatpush2.msra.mxu0 %v1516
        %1740 = vmatprep.subr.mxu0 0.0
        %1741 = vmatpush2.msra.mxu0 %v1515
        %1742 = vmatprep.subr.mxu0 0.0
        %1743 = vmatpush2.msra.mxu0 %v1514
        %1744 = vmatprep.mubr.f32.mxu0 %v1427
        %1745 = vmatmul.mubr.f32.gmra.mxu0 %v1426
        %v1746 = vpop.f32.mrf.mxu0
        %v1747 = vadd.f32 %v1672, %v1746
        %v1748 = vpop.f32.mrf.mxu0
        %1749 = vmatprep.mubr.f32.mxu0 %v1433
        %1750 = vmatmul.mubr.f32.gmra.mxu0 %v1432
        %v1751 = vpop.f32.mrf.mxu0
        %v1752 = vadd.f32 %v1677, %v1751
        %v1753 = vpop.f32.mrf.mxu0
        %1754 = vdwg.mxu0
        %1755 = vst [vmem:[%s288] sm:$0xff] %v1747
        %1756 = vst [vmem:[%s288 + $0x8] sm:$0xff] %v1752
        %v1757 = vld [vmem:[%s4] sm:$0xff]
        %v1758 = vld [vmem:[%s4 + $0x8] sm:$0xff]
        %v1759 = vld [vmem:[%s4 + $0x10] sm:$0xff]
        %v1760 = vld [vmem:[%s4 + $0x18] sm:$0xff]
        %v1761 = vld [vmem:[%s4 + $0x20] sm:$0xff]
        %v1762 = vld [vmem:[%s4 + $0x28] sm:$0xff]
        %v1763 = vld [vmem:[%s4 + $0x30] sm:$0xff]
        %v1764 = vld [vmem:[%s4 + $0x38] sm:$0xff]
        %v1765 = vld [vmem:[%s4 + $0x40] sm:$0xff]
        %v1766 = vld [vmem:[%s4 + $0x48] sm:$0xff]
        %v1767 = vld [vmem:[%s4 + $0x50] sm:$0xff]
        %v1768 = vld [vmem:[%s4 + $0x58] sm:$0xff]
        %v1769 = vld [vmem:[%s4 + $0x60] sm:$0xff]
        %v1770 = vld [vmem:[%s4 + $0x68] sm:$0xff]
        %v1771 = vld [vmem:[%s4 + $0x70] sm:$0xff]
        %v1772 = vld [vmem:[%s4 + $0x78] sm:$0xff]
        %v1773 = vld [vmem:[%s4 + $0x80] sm:$0xff]
        %v1774 = vld [vmem:[%s4 + $0x88] sm:$0xff]
        %v1775 = vld [vmem:[%s4 + $0x90] sm:$0xff]
        %v1776 = vld [vmem:[%s4 + $0x98] sm:$0xff]
        %v1777 = vld [vmem:[%s4 + $0xa0] sm:$0xff]
        %v1778 = vld [vmem:[%s4 + $0xa8] sm:$0xff]
        %v1779 = vld [vmem:[%s4 + $0xb0] sm:$0xff]
        %v1780 = vld [vmem:[%s4 + $0xb8] sm:$0xff]
        %v1781 = vld [vmem:[%s4 + $0xc0] sm:$0xff]
        %v1782 = vld [vmem:[%s4 + $0xc8] sm:$0xff]
        %v1783 = vld [vmem:[%s4 + $0xd0] sm:$0xff]
        %v1784 = vld [vmem:[%s4 + $0xd8] sm:$0xff]
        %v1785 = vld [vmem:[%s4 + $0xe0] sm:$0xff]
        %v1786 = vld [vmem:[%s4 + $0xe8] sm:$0xff]
        %v1787 = vld [vmem:[%s4 + $0xf0] sm:$0xff]
        %v1788 = vld [vmem:[%s4 + $0xf8] sm:$0xff]
        %v1789 = vld [vmem:[%s4 + $0x100] sm:$0xff]
        %v1790 = vld [vmem:[%s4 + $0x108] sm:$0xff]
        %v1791 = vld [vmem:[%s4 + $0x110] sm:$0xff]
        %v1792 = vld [vmem:[%s4 + $0x118] sm:$0xff]
        %v1793 = vld [vmem:[%s4 + $0x120] sm:$0xff]
        %v1794 = vld [vmem:[%s4 + $0x128] sm:$0xff]
        %v1795 = vld [vmem:[%s4 + $0x130] sm:$0xff]
        %v1796 = vld [vmem:[%s4 + $0x138] sm:$0xff]
        %v1797 = vld [vmem:[%s4 + $0x140] sm:$0xff]
        %v1798 = vld [vmem:[%s4 + $0x148] sm:$0xff]
        %v1799 = vld [vmem:[%s4 + $0x150] sm:$0xff]
        %v1800 = vld [vmem:[%s4 + $0x158] sm:$0xff]
        %v1801 = vld [vmem:[%s4 + $0x160] sm:$0xff]
        %v1802 = vld [vmem:[%s4 + $0x168] sm:$0xff]
        %v1803 = vld [vmem:[%s4 + $0x170] sm:$0xff]
        %v1804 = vld [vmem:[%s4 + $0x178] sm:$0xff]
        %v1805 = vld [vmem:[%s4 + $0x180] sm:$0xff]
        %v1806 = vld [vmem:[%s4 + $0x188] sm:$0xff]
        %v1807 = vld [vmem:[%s4 + $0x190] sm:$0xff]
        %v1808 = vld [vmem:[%s4 + $0x198] sm:$0xff]
        %v1809 = vld [vmem:[%s4 + $0x1a0] sm:$0xff]
        %v1810 = vld [vmem:[%s4 + $0x1a8] sm:$0xff]
        %v1811 = vld [vmem:[%s4 + $0x1b0] sm:$0xff]
        %v1812 = vld [vmem:[%s4 + $0x1b8] sm:$0xff]
        %v1813 = vld [vmem:[%s4 + $0x1c0] sm:$0xff]
        %v1814 = vld [vmem:[%s4 + $0x1c8] sm:$0xff]
        %v1815 = vld [vmem:[%s4 + $0x1d0] sm:$0xff]
        %v1816 = vld [vmem:[%s4 + $0x1d8] sm:$0xff]
        %v1817 = vld [vmem:[%s4 + $0x1e0] sm:$0xff]
        %v1818 = vld [vmem:[%s4 + $0x1e8] sm:$0xff]
        %v1819 = vld [vmem:[%s4 + $0x1f0] sm:$0xff]
        %v1820 = vld [vmem:[%s4 + $0x1f8] sm:$0xff]
        %v1821 = vld [vmem:[%s4 + $0x200] sm:$0xff]
        %v1822 = vld [vmem:[%s4 + $0x208] sm:$0xff]
        %v1823 = vld [vmem:[%s4 + $0x210] sm:$0xff]
        %v1824 = vld [vmem:[%s4 + $0x218] sm:$0xff]
        %v1825 = vld [vmem:[%s4 + $0x220] sm:$0xff]
        %v1826 = vld [vmem:[%s4 + $0x228] sm:$0xff]
        %v1827 = vld [vmem:[%s4 + $0x230] sm:$0xff]
        %v1828 = vld [vmem:[%s4 + $0x238] sm:$0xff]
        %v1829 = vld [vmem:[%s4 + $0x240] sm:$0xff]
        %v1830 = vld [vmem:[%s4 + $0x248] sm:$0xff]
        %v1831 = vld [vmem:[%s4 + $0x250] sm:$0xff]
        %v1832 = vld [vmem:[%s4 + $0x258] sm:$0xff]
        %v1833 = vld [vmem:[%s4 + $0x260] sm:$0xff]
        %v1834 = vld [vmem:[%s4 + $0x268] sm:$0xff]
        %v1835 = vld [vmem:[%s4 + $0x270] sm:$0xff]
        %v1836 = vld [vmem:[%s4 + $0x278] sm:$0xff]
        %v1837 = vld [vmem:[%s4 + $0x280] sm:$0xff]
        %v1838 = vld [vmem:[%s4 + $0x288] sm:$0xff]
        %v1839 = vld [vmem:[%s4 + $0x290] sm:$0xff]
        %v1840 = vld [vmem:[%s4 + $0x298] sm:$0xff]
        %v1841 = vld [vmem:[%s4 + $0x2a0] sm:$0xff]
        %v1842 = vld [vmem:[%s4 + $0x2a8] sm:$0xff]
        %v1843 = vld [vmem:[%s4 + $0x2b0] sm:$0xff]
        %v1844 = vld [vmem:[%s4 + $0x2b8] sm:$0xff]
        %v1845 = vld [vmem:[%s4 + $0x2c0] sm:$0xff]
        %v1846 = vld [vmem:[%s4 + $0x2c8] sm:$0xff]
        %v1847 = vld [vmem:[%s4 + $0x2d0] sm:$0xff]
        %v1848 = vld [vmem:[%s4 + $0x2d8] sm:$0xff]
        %v1849 = vld [vmem:[%s4 + $0x2e0] sm:$0xff]
        %v1850 = vld [vmem:[%s4 + $0x2e8] sm:$0xff]
        %v1851 = vld [vmem:[%s4 + $0x2f0] sm:$0xff]
        %v1852 = vld [vmem:[%s4 + $0x2f8] sm:$0xff]
        %v1853 = vld [vmem:[%s4 + $0x300] sm:$0xff]
        %v1854 = vld [vmem:[%s4 + $0x308] sm:$0xff]
        %v1855 = vld [vmem:[%s4 + $0x310] sm:$0xff]
        %v1856 = vld [vmem:[%s4 + $0x318] sm:$0xff]
        %v1857 = vld [vmem:[%s4 + $0x320] sm:$0xff]
        %v1858 = vld [vmem:[%s4 + $0x328] sm:$0xff]
        %v1859 = vld [vmem:[%s4 + $0x330] sm:$0xff]
        %v1860 = vld [vmem:[%s4 + $0x338] sm:$0xff]
        %v1861 = vld [vmem:[%s4 + $0x340] sm:$0xff]
        %v1862 = vld [vmem:[%s4 + $0x348] sm:$0xff]
        %v1863 = vld [vmem:[%s4 + $0x350] sm:$0xff]
        %v1864 = vld [vmem:[%s4 + $0x358] sm:$0xff]
        %v1865 = vld [vmem:[%s4 + $0x360] sm:$0xff]
        %v1866 = vld [vmem:[%s4 + $0x368] sm:$0xff]
        %v1867 = vld [vmem:[%s4 + $0x370] sm:$0xff]
        %v1868 = vld [vmem:[%s4 + $0x378] sm:$0xff]
        %v1869 = vld [vmem:[%s4 + $0x380] sm:$0xff]
        %v1870 = vld [vmem:[%s4 + $0x388] sm:$0xff]
        %v1871 = vld [vmem:[%s4 + $0x390] sm:$0xff]
        %v1872 = vld [vmem:[%s4 + $0x398] sm:$0xff]
        %v1873 = vld [vmem:[%s4 + $0x3a0] sm:$0xff]
        %v1874 = vld [vmem:[%s4 + $0x3a8] sm:$0xff]
        %v1875 = vld [vmem:[%s4 + $0x3b0] sm:$0xff]
        %v1876 = vld [vmem:[%s4 + $0x3b8] sm:$0xff]
        %v1877 = vld [vmem:[%s4 + $0x3c0] sm:$0xff]
        %v1878 = vld [vmem:[%s4 + $0x3c8] sm:$0xff]
        %v1879 = vld [vmem:[%s4 + $0x3d0] sm:$0xff]
        %v1880 = vld [vmem:[%s4 + $0x3d8] sm:$0xff]
        %v1881 = vld [vmem:[%s4 + $0x3e0] sm:$0xff]
        %v1882 = vld [vmem:[%s4 + $0x3e8] sm:$0xff]
        %v1883 = vld [vmem:[%s4 + $0x3f0] sm:$0xff]
        %v1884 = vld [vmem:[%s4 + $0x3f8] sm:$0xff]
        %v1885 = vld [vmem:[%s4 + $0x400] sm:$0xff]
        %v1886 = vld [vmem:[%s4 + $0x408] sm:$0xff]
        %v1887 = vld [vmem:[%s4 + $0x410] sm:$0xff]
        %v1888 = vld [vmem:[%s4 + $0x418] sm:$0xff]
        %v1889 = vld [vmem:[%s4 + $0x420] sm:$0xff]
        %v1890 = vld [vmem:[%s4 + $0x428] sm:$0xff]
        %v1891 = vld [vmem:[%s4 + $0x430] sm:$0xff]
        %v1892 = vld [vmem:[%s4 + $0x438] sm:$0xff]
        %v1893 = vld [vmem:[%s4 + $0x440] sm:$0xff]
        %v1894 = vld [vmem:[%s4 + $0x448] sm:$0xff]
        %v1895 = vld [vmem:[%s4 + $0x450] sm:$0xff]
        %v1896 = vld [vmem:[%s4 + $0x458] sm:$0xff]
        %v1897 = vld [vmem:[%s4 + $0x460] sm:$0xff]
        %v1898 = vld [vmem:[%s4 + $0x468] sm:$0xff]
        %v1899 = vld [vmem:[%s4 + $0x470] sm:$0xff]
        %v1900 = vld [vmem:[%s4 + $0x478] sm:$0xff]
        %v1901 = vld [vmem:[%s4 + $0x480] sm:$0xff]
        %v1902 = vld [vmem:[%s4 + $0x488] sm:$0xff]
        %v1903 = vld [vmem:[%s4 + $0x490] sm:$0xff]
        %v1904 = vld [vmem:[%s4 + $0x498] sm:$0xff]
        %v1905 = vld [vmem:[%s4 + $0x4a0] sm:$0xff]
        %v1906 = vld [vmem:[%s4 + $0x4a8] sm:$0xff]
        %v1907 = vld [vmem:[%s4 + $0x4b0] sm:$0xff]
        %v1908 = vld [vmem:[%s4 + $0x4b8] sm:$0xff]
        %v1909 = vld [vmem:[%s4 + $0x4c0] sm:$0xff]
        %v1910 = vld [vmem:[%s4 + $0x4c8] sm:$0xff]
        %v1911 = vld [vmem:[%s4 + $0x4d0] sm:$0xff]
        %v1912 = vld [vmem:[%s4 + $0x4d8] sm:$0xff]
        %v1913 = vld [vmem:[%s4 + $0x4e0] sm:$0xff]
        %v1914 = vld [vmem:[%s4 + $0x4e8] sm:$0xff]
        %v1915 = vld [vmem:[%s4 + $0x4f0] sm:$0xff]
        %v1916 = vld [vmem:[%s4 + $0x4f8] sm:$0xff]
        %v1917 = vld [vmem:[%s4 + $0x500] sm:$0xff]
        %v1918 = vld [vmem:[%s4 + $0x508] sm:$0xff]
        %v1919 = vld [vmem:[%s4 + $0x510] sm:$0xff]
        %v1920 = vld [vmem:[%s4 + $0x518] sm:$0xff]
        %v1921 = vld [vmem:[%s4 + $0x520] sm:$0xff]
        %v1922 = vld [vmem:[%s4 + $0x528] sm:$0xff]
        %v1923 = vld [vmem:[%s4 + $0x530] sm:$0xff]
        %v1924 = vld [vmem:[%s4 + $0x538] sm:$0xff]
        %v1925 = vld [vmem:[%s4 + $0x540] sm:$0xff]
        %v1926 = vld [vmem:[%s4 + $0x548] sm:$0xff]
        %v1927 = vld [vmem:[%s4 + $0x550] sm:$0xff]
        %v1928 = vld [vmem:[%s4 + $0x558] sm:$0xff]
        %v1929 = vld [vmem:[%s4 + $0x560] sm:$0xff]
        %v1930 = vld [vmem:[%s4 + $0x568] sm:$0xff]
        %v1931 = vld [vmem:[%s4 + $0x570] sm:$0xff]
        %v1932 = vld [vmem:[%s4 + $0x578] sm:$0xff]
        %v1933 = vld [vmem:[%s4 + $0x580] sm:$0xff]
        %v1934 = vld [vmem:[%s4 + $0x588] sm:$0xff]
        %v1935 = vld [vmem:[%s4 + $0x590] sm:$0xff]
        %v1936 = vld [vmem:[%s4 + $0x598] sm:$0xff]
        %v1937 = vld [vmem:[%s4 + $0x5a0] sm:$0xff]
        %v1938 = vld [vmem:[%s4 + $0x5a8] sm:$0xff]
        %v1939 = vld [vmem:[%s4 + $0x5b0] sm:$0xff]
        %v1940 = vld [vmem:[%s4 + $0x5b8] sm:$0xff]
        %v1941 = vld [vmem:[%s4 + $0x5c0] sm:$0xff]
        %v1942 = vld [vmem:[%s4 + $0x5c8] sm:$0xff]
        %v1943 = vld [vmem:[%s4 + $0x5d0] sm:$0xff]
        %v1944 = vld [vmem:[%s4 + $0x5d8] sm:$0xff]
        %v1945 = vld [vmem:[%s4 + $0x5e0] sm:$0xff]
        %v1946 = vld [vmem:[%s4 + $0x5e8] sm:$0xff]
        %v1947 = vld [vmem:[%s4 + $0x5f0] sm:$0xff]
        %v1948 = vld [vmem:[%s4 + $0x5f8] sm:$0xff]
        %v1949 = vld [vmem:[%s4 + $0x600] sm:$0xff]
        %v1950 = vld [vmem:[%s4 + $0x608] sm:$0xff]
        %v1951 = vld [vmem:[%s4 + $0x610] sm:$0xff]
        %v1952 = vld [vmem:[%s4 + $0x618] sm:$0xff]
        %v1953 = vld [vmem:[%s4 + $0x620] sm:$0xff]
        %v1954 = vld [vmem:[%s4 + $0x628] sm:$0xff]
        %v1955 = vld [vmem:[%s4 + $0x630] sm:$0xff]
        %v1956 = vld [vmem:[%s4 + $0x638] sm:$0xff]
        %v1957 = vld [vmem:[%s4 + $0x640] sm:$0xff]
        %v1958 = vld [vmem:[%s4 + $0x648] sm:$0xff]
        %v1959 = vld [vmem:[%s4 + $0x650] sm:$0xff]
        %v1960 = vld [vmem:[%s4 + $0x658] sm:$0xff]
        %v1961 = vld [vmem:[%s4 + $0x660] sm:$0xff]
        %v1962 = vld [vmem:[%s4 + $0x668] sm:$0xff]
        %v1963 = vld [vmem:[%s4 + $0x670] sm:$0xff]
        %v1964 = vld [vmem:[%s4 + $0x678] sm:$0xff]
        %v1965 = vld [vmem:[%s4 + $0x680] sm:$0xff]
        %v1966 = vld [vmem:[%s4 + $0x688] sm:$0xff]
        %v1967 = vld [vmem:[%s4 + $0x690] sm:$0xff]
        %v1968 = vld [vmem:[%s4 + $0x698] sm:$0xff]
        %v1969 = vld [vmem:[%s4 + $0x6a0] sm:$0xff]
        %v1970 = vld [vmem:[%s4 + $0x6a8] sm:$0xff]
        %v1971 = vld [vmem:[%s4 + $0x6b0] sm:$0xff]
        %v1972 = vld [vmem:[%s4 + $0x6b8] sm:$0xff]
        %v1973 = vld [vmem:[%s4 + $0x6c0] sm:$0xff]
        %v1974 = vld [vmem:[%s4 + $0x6c8] sm:$0xff]
        %v1975 = vld [vmem:[%s4 + $0x6d0] sm:$0xff]
        %v1976 = vld [vmem:[%s4 + $0x6d8] sm:$0xff]
        %v1977 = vld [vmem:[%s4 + $0x6e0] sm:$0xff]
        %v1978 = vld [vmem:[%s4 + $0x6e8] sm:$0xff]
        %v1979 = vld [vmem:[%s4 + $0x6f0] sm:$0xff]
        %v1980 = vld [vmem:[%s4 + $0x6f8] sm:$0xff]
        %v1981 = vld [vmem:[%s4 + $0x700] sm:$0xff]
        %v1982 = vld [vmem:[%s4 + $0x708] sm:$0xff]
        %v1983 = vld [vmem:[%s4 + $0x710] sm:$0xff]
        %v1984 = vld [vmem:[%s4 + $0x718] sm:$0xff]
        %v1985 = vld [vmem:[%s4 + $0x720] sm:$0xff]
        %v1986 = vld [vmem:[%s4 + $0x728] sm:$0xff]
        %v1987 = vld [vmem:[%s4 + $0x730] sm:$0xff]
        %v1988 = vld [vmem:[%s4 + $0x738] sm:$0xff]
        %v1989 = vld [vmem:[%s4 + $0x740] sm:$0xff]
        %v1990 = vld [vmem:[%s4 + $0x748] sm:$0xff]
        %v1991 = vld [vmem:[%s4 + $0x750] sm:$0xff]
        %v1992 = vld [vmem:[%s4 + $0x758] sm:$0xff]
        %v1993 = vld [vmem:[%s4 + $0x760] sm:$0xff]
        %v1994 = vld [vmem:[%s4 + $0x768] sm:$0xff]
        %v1995 = vld [vmem:[%s4 + $0x770] sm:$0xff]
        %v1996 = vld [vmem:[%s4 + $0x778] sm:$0xff]
        %v1997 = vld [vmem:[%s4 + $0x780] sm:$0xff]
        %v1998 = vld [vmem:[%s4 + $0x788] sm:$0xff]
        %v1999 = vld [vmem:[%s4 + $0x790] sm:$0xff]
        %v2000 = vld [vmem:[%s4 + $0x798] sm:$0xff]
        %v2001 = vld [vmem:[%s4 + $0x7a0] sm:$0xff]
        %v2002 = vld [vmem:[%s4 + $0x7a8] sm:$0xff]
        %v2003 = vld [vmem:[%s4 + $0x7b0] sm:$0xff]
        %v2004 = vld [vmem:[%s4 + $0x7b8] sm:$0xff]
        %v2005 = vld [vmem:[%s4 + $0x7c0] sm:$0xff]
        %v2006 = vld [vmem:[%s4 + $0x7c8] sm:$0xff]
        %v2007 = vld [vmem:[%s4 + $0x7d0] sm:$0xff]
        %v2008 = vld [vmem:[%s4 + $0x7d8] sm:$0xff]
        %v2009 = vld [vmem:[%s4 + $0x7e0] sm:$0xff]
        %v2010 = vld [vmem:[%s4 + $0x7e8] sm:$0xff]
        %v2011 = vld [vmem:[%s4 + $0x7f0] sm:$0xff]
        %v2012 = vld [vmem:[%s4 + $0x7f8] sm:$0xff]
        %2013 = vmatprep.subr.mxu0 %v1998
        %2014 = vmatpush1.msra.mxu0 %v1997
        %2015 = vmatprep.subr.mxu0 %v1982
        %2016 = vmatpush1.msra.mxu0 %v1981
        %2017 = vmatprep.subr.mxu0 %v1966
        %2018 = vmatpush1.msra.mxu0 %v1965
        %2019 = vmatprep.subr.mxu0 %v1950
        %2020 = vmatpush1.msra.mxu0 %v1949
        %2021 = vmatprep.subr.mxu0 %v1934
        %2022 = vmatpush1.msra.mxu0 %v1933
        %2023 = vmatprep.subr.mxu0 %v1918
        %2024 = vmatpush1.msra.mxu0 %v1917
        %2025 = vmatprep.subr.mxu0 %v1902
        %2026 = vmatpush1.msra.mxu0 %v1901
        %2027 = vmatprep.subr.mxu0 %v1886
        %2028 = vmatpush1.msra.mxu0 %v1885
        %2029 = vmatprep.subr.mxu0 %v1870
        %2030 = vmatpush1.msra.mxu0 %v1869
        %2031 = vmatprep.subr.mxu0 %v1854
        %2032 = vmatpush1.msra.mxu0 %v1853
        %2033 = vmatprep.subr.mxu0 %v1838
        %2034 = vmatpush1.msra.mxu0 %v1837
        %2035 = vmatprep.subr.mxu0 %v1822
        %2036 = vmatpush1.msra.mxu0 %v1821
        %2037 = vmatprep.subr.mxu0 %v1806
        %2038 = vmatpush1.msra.mxu0 %v1805
        %2039 = vmatprep.subr.mxu0 %v1790
        %2040 = vmatpush1.msra.mxu0 %v1789
        %2041 = vmatprep.subr.mxu0 %v1774
        %2042 = vmatpush1.msra.mxu0 %v1773
        %2043 = vmatprep.subr.mxu0 %v1758
        %2044 = vmatpush1.msra.mxu0 %v1757
        %2045 = vmatprep.subr.mxu0 0.0
        %2046 = vmatpush2.msra.mxu0 0.0
        %2047 = vmatprep.subr.mxu0 0.0
        %2048 = vmatpush2.msra.mxu0 0.0
        %2049 = vmatprep.subr.mxu0 0.0
        %2050 = vmatpush2.msra.mxu0 0.0
        %2051 = vmatprep.subr.mxu0 0.0
        %2052 = vmatpush2.msra.mxu0 0.0
        %2053 = vmatprep.subr.mxu0 0.0
        %2054 = vmatpush2.msra.mxu0 0.0
        %2055 = vmatprep.subr.mxu0 0.0
        %2056 = vmatpush2.msra.mxu0 0.0
        %2057 = vmatprep.subr.mxu0 0.0
        %2058 = vmatpush2.msra.mxu0 0.0
        %2059 = vmatprep.subr.mxu0 0.0
        %2060 = vmatpush2.msra.mxu0 0.0
        %2061 = vmatprep.subr.mxu0 0.0
        %2062 = vmatpush2.msra.mxu0 0.0
        %2063 = vmatprep.subr.mxu0 0.0
        %2064 = vmatpush2.msra.mxu0 0.0
        %2065 = vmatprep.subr.mxu0 0.0
        %2066 = vmatpush2.msra.mxu0 0.0
        %2067 = vmatprep.subr.mxu0 0.0
        %2068 = vmatpush2.msra.mxu0 0.0
        %2069 = vmatprep.subr.mxu0 0.0
        %2070 = vmatpush2.msra.mxu0 0.0
        %2071 = vmatprep.subr.mxu0 0.0
        %2072 = vmatpush2.msra.mxu0 0.0
        %2073 = vmatprep.subr.mxu0 0.0
        %2074 = vmatpush2.msra.mxu0 0.0
        %2075 = vmatprep.subr.mxu0 0.0
        %2076 = vmatpush2.msra.mxu0 0.0
        %2077 = vmatprep.mubr.f32.mxu0 0.0
        %2078 = vmatmul.mubr.f32.gmra.mxu0 %v1747
        %v2079 = vpop.f32.mrf.mxu0
        %v2080 = vadd.f32 0.0, %v2079
        %v2081 = vpop.f32.mrf.mxu0
        %v2082 = vadd.f32 0.0, %v2081
        %2083 = vmatprep.mubr.f32.mxu0 0.0
        %2084 = vmatmul.mubr.f32.gmra.mxu0 %v1752
        %v2085 = vpop.f32.mrf.mxu0
        %v2086 = vpop.f32.mrf.mxu0
        %2087 = vdwg.mxu0
        %2088 = vmatprep.subr.mxu0 %v2000
        %2089 = vmatpush1.msra.mxu0 %v1999
        %2090 = vmatprep.subr.mxu0 %v1984
        %2091 = vmatpush1.msra.mxu0 %v1983
        %2092 = vmatprep.subr.mxu0 %v1968
        %2093 = vmatpush1.msra.mxu0 %v1967
        %2094 = vmatprep.subr.mxu0 %v1952
        %2095 = vmatpush1.msra.mxu0 %v1951
        %2096 = vmatprep.subr.mxu0 %v1936
        %2097 = vmatpush1.msra.mxu0 %v1935
        %2098 = vmatprep.subr.mxu0 %v1920
        %2099 = vmatpush1.msra.mxu0 %v1919
        %2100 = vmatprep.subr.mxu0 %v1904
        %2101 = vmatpush1.msra.mxu0 %v1903
        %2102 = vmatprep.subr.mxu0 %v1888
        %2103 = vmatpush1.msra.mxu0 %v1887
        %2104 = vmatprep.subr.mxu0 %v1872
        %2105 = vmatpush1.msra.mxu0 %v1871
        %2106 = vmatprep.subr.mxu0 %v1856
        %2107 = vmatpush1.msra.mxu0 %v1855
        %2108 = vmatprep.subr.mxu0 %v1840
        %2109 = vmatpush1.msra.mxu0 %v1839
        %2110 = vmatprep.subr.mxu0 %v1824
        %2111 = vmatpush1.msra.mxu0 %v1823
        %2112 = vmatprep.subr.mxu0 %v1808
        %2113 = vmatpush1.msra.mxu0 %v1807
        %2114 = vmatprep.subr.mxu0 %v1792
        %2115 = vmatpush1.msra.mxu0 %v1791
        %2116 = vmatprep.subr.mxu0 %v1776
        %2117 = vmatpush1.msra.mxu0 %v1775
        %2118 = vmatprep.subr.mxu0 %v1760
        %2119 = vmatpush1.msra.mxu0 %v1759
        %2120 = vmatprep.subr.mxu0 0.0
        %2121 = vmatpush2.msra.mxu0 0.0
        %2122 = vmatprep.subr.mxu0 0.0
        %2123 = vmatpush2.msra.mxu0 0.0
        %2124 = vmatprep.subr.mxu0 0.0
        %2125 = vmatpush2.msra.mxu0 0.0
        %2126 = vmatprep.subr.mxu0 0.0
        %2127 = vmatpush2.msra.mxu0 0.0
        %2128 = vmatprep.subr.mxu0 0.0
        %2129 = vmatpush2.msra.mxu0 0.0
        %2130 = vmatprep.subr.mxu0 0.0
        %2131 = vmatpush2.msra.mxu0 0.0
        %2132 = vmatprep.subr.mxu0 0.0
        %2133 = vmatpush2.msra.mxu0 0.0
        %2134 = vmatprep.subr.mxu0 0.0
        %2135 = vmatpush2.msra.mxu0 0.0
        %2136 = vmatprep.subr.mxu0 0.0
        %2137 = vmatpush2.msra.mxu0 0.0
        %2138 = vmatprep.subr.mxu0 0.0
        %2139 = vmatpush2.msra.mxu0 0.0
        %2140 = vmatprep.subr.mxu0 0.0
        %2141 = vmatpush2.msra.mxu0 0.0
        %2142 = vmatprep.subr.mxu0 0.0
        %2143 = vmatpush2.msra.mxu0 0.0
        %2144 = vmatprep.subr.mxu0 0.0
        %2145 = vmatpush2.msra.mxu0 0.0
        %2146 = vmatprep.subr.mxu0 0.0
        %2147 = vmatpush2.msra.mxu0 0.0
        %2148 = vmatprep.subr.mxu0 0.0
        %2149 = vmatpush2.msra.mxu0 0.0
        %2150 = vmatprep.subr.mxu0 0.0
        %2151 = vmatpush2.msra.mxu0 0.0
        %2152 = vmatprep.mubr.f32.mxu0 0.0
        %2153 = vmatmul.mubr.f32.gmra.mxu0 %v1747
        %v2154 = vpop.f32.mrf.mxu0
        %v2155 = vadd.f32 0.0, %v2154
        %v2156 = vpop.f32.mrf.mxu0
        %v2157 = vadd.f32 0.0, %v2156
        %2158 = vmatprep.mubr.f32.mxu0 0.0
        %2159 = vmatmul.mubr.f32.gmra.mxu0 %v1752
        %v2160 = vpop.f32.mrf.mxu0
        %v2161 = vpop.f32.mrf.mxu0
        %2162 = vdwg.mxu0
        %2163 = vmatprep.subr.mxu0 %v2002
        %2164 = vmatpush1.msra.mxu0 %v2001
        %2165 = vmatprep.subr.mxu0 %v1986
        %2166 = vmatpush1.msra.mxu0 %v1985
        %2167 = vmatprep.subr.mxu0 %v1970
        %2168 = vmatpush1.msra.mxu0 %v1969
        %2169 = vmatprep.subr.mxu0 %v1954
        %2170 = vmatpush1.msra.mxu0 %v1953
        %2171 = vmatprep.subr.mxu0 %v1938
        %2172 = vmatpush1.msra.mxu0 %v1937
        %2173 = vmatprep.subr.mxu0 %v1922
        %2174 = vmatpush1.msra.mxu0 %v1921
        %2175 = vmatprep.subr.mxu0 %v1906
        %2176 = vmatpush1.msra.mxu0 %v1905
        %2177 = vmatprep.subr.mxu0 %v1890
        %2178 = vmatpush1.msra.mxu0 %v1889
        %2179 = vmatprep.subr.mxu0 %v1874
        %2180 = vmatpush1.msra.mxu0 %v1873
        %2181 = vmatprep.subr.mxu0 %v1858
        %2182 = vmatpush1.msra.mxu0 %v1857
        %2183 = vmatprep.subr.mxu0 %v1842
        %2184 = vmatpush1.msra.mxu0 %v1841
        %2185 = vmatprep.subr.mxu0 %v1826
        %2186 = vmatpush1.msra.mxu0 %v1825
        %2187 = vmatprep.subr.mxu0 %v1810
        %2188 = vmatpush1.msra.mxu0 %v1809
        %2189 = vmatprep.subr.mxu0 %v1794
        %2190 = vmatpush1.msra.mxu0 %v1793
        %2191 = vmatprep.subr.mxu0 %v1778
        %2192 = vmatpush1.msra.mxu0 %v1777
        %2193 = vmatprep.subr.mxu0 %v1762
        %2194 = vmatpush1.msra.mxu0 %v1761
        %2195 = vmatprep.subr.mxu0 0.0
        %2196 = vmatpush2.msra.mxu0 0.0
        %2197 = vmatprep.subr.mxu0 0.0
        %2198 = vmatpush2.msra.mxu0 0.0
        %2199 = vmatprep.subr.mxu0 0.0
        %2200 = vmatpush2.msra.mxu0 0.0
        %2201 = vmatprep.subr.mxu0 0.0
        %2202 = vmatpush2.msra.mxu0 0.0
        %2203 = vmatprep.subr.mxu0 0.0
        %2204 = vmatpush2.msra.mxu0 0.0
        %2205 = vmatprep.subr.mxu0 0.0
        %2206 = vmatpush2.msra.mxu0 0.0
        %2207 = vmatprep.subr.mxu0 0.0
        %2208 = vmatpush2.msra.mxu0 0.0
        %2209 = vmatprep.subr.mxu0 0.0
        %2210 = vmatpush2.msra.mxu0 0.0
        %2211 = vmatprep.subr.mxu0 0.0
        %2212 = vmatpush2.msra.mxu0 0.0
        %2213 = vmatprep.subr.mxu0 0.0
        %2214 = vmatpush2.msra.mxu0 0.0
        %2215 = vmatprep.subr.mxu0 0.0
        %2216 = vmatpush2.msra.mxu0 0.0
        %2217 = vmatprep.subr.mxu0 0.0
        %2218 = vmatpush2.msra.mxu0 0.0
        %2219 = vmatprep.subr.mxu0 0.0
        %2220 = vmatpush2.msra.mxu0 0.0
        %2221 = vmatprep.subr.mxu0 0.0
        %2222 = vmatpush2.msra.mxu0 0.0
        %2223 = vmatprep.subr.mxu0 0.0
        %2224 = vmatpush2.msra.mxu0 0.0
        %2225 = vmatprep.subr.mxu0 0.0
        %2226 = vmatpush2.msra.mxu0 0.0
        %2227 = vmatprep.mubr.f32.mxu0 0.0
        %2228 = vmatmul.mubr.f32.gmra.mxu0 %v1747
        %v2229 = vpop.f32.mrf.mxu0
        %v2230 = vadd.f32 0.0, %v2229
        %v2231 = vpop.f32.mrf.mxu0
        %v2232 = vadd.f32 0.0, %v2231
        %2233 = vmatprep.mubr.f32.mxu0 0.0
        %2234 = vmatmul.mubr.f32.gmra.mxu0 %v1752
        %v2235 = vpop.f32.mrf.mxu0
        %v2236 = vpop.f32.mrf.mxu0
        %2237 = vdwg.mxu0
        %2238 = vmatprep.subr.mxu0 %v2004
        %2239 = vmatpush1.msra.mxu0 %v2003
        %2240 = vmatprep.subr.mxu0 %v1988
        %2241 = vmatpush1.msra.mxu0 %v1987
        %2242 = vmatprep.subr.mxu0 %v1972
        %2243 = vmatpush1.msra.mxu0 %v1971
        %2244 = vmatprep.subr.mxu0 %v1956
        %2245 = vmatpush1.msra.mxu0 %v1955
        %2246 = vmatprep.subr.mxu0 %v1940
        %2247 = vmatpush1.msra.mxu0 %v1939
        %2248 = vmatprep.subr.mxu0 %v1924
        %2249 = vmatpush1.msra.mxu0 %v1923
        %2250 = vmatprep.subr.mxu0 %v1908
        %2251 = vmatpush1.msra.mxu0 %v1907
        %2252 = vmatprep.subr.mxu0 %v1892
        %2253 = vmatpush1.msra.mxu0 %v1891
        %2254 = vmatprep.subr.mxu0 %v1876
        %2255 = vmatpush1.msra.mxu0 %v1875
        %2256 = vmatprep.subr.mxu0 %v1860
        %2257 = vmatpush1.msra.mxu0 %v1859
        %2258 = vmatprep.subr.mxu0 %v1844
        %2259 = vmatpush1.msra.mxu0 %v1843
        %2260 = vmatprep.subr.mxu0 %v1828
        %2261 = vmatpush1.msra.mxu0 %v1827
        %2262 = vmatprep.subr.mxu0 %v1812
        %2263 = vmatpush1.msra.mxu0 %v1811
        %2264 = vmatprep.subr.mxu0 %v1796
        %2265 = vmatpush1.msra.mxu0 %v1795
        %2266 = vmatprep.subr.mxu0 %v1780
        %2267 = vmatpush1.msra.mxu0 %v1779
        %2268 = vmatprep.subr.mxu0 %v1764
        %2269 = vmatpush1.msra.mxu0 %v1763
        %2270 = vmatprep.subr.mxu0 0.0
        %2271 = vmatpush2.msra.mxu0 0.0
        %2272 = vmatprep.subr.mxu0 0.0
        %2273 = vmatpush2.msra.mxu0 0.0
        %2274 = vmatprep.subr.mxu0 0.0
        %2275 = vmatpush2.msra.mxu0 0.0
        %2276 = vmatprep.subr.mxu0 0.0
        %2277 = vmatpush2.msra.mxu0 0.0
        %2278 = vmatprep.subr.mxu0 0.0
        %2279 = vmatpush2.msra.mxu0 0.0
        %2280 = vmatprep.subr.mxu0 0.0
        %2281 = vmatpush2.msra.mxu0 0.0
        %2282 = vmatprep.subr.mxu0 0.0
        %2283 = vmatpush2.msra.mxu0 0.0
        %2284 = vmatprep.subr.mxu0 0.0
        %2285 = vmatpush2.msra.mxu0 0.0
        %2286 = vmatprep.subr.mxu0 0.0
        %2287 = vmatpush2.msra.mxu0 0.0
        %2288 = vmatprep.subr.mxu0 0.0
        %2289 = vmatpush2.msra.mxu0 0.0
        %2290 = vmatprep.subr.mxu0 0.0
        %2291 = vmatpush2.msra.mxu0 0.0
        %2292 = vmatprep.subr.mxu0 0.0
        %2293 = vmatpush2.msra.mxu0 0.0
        %2294 = vmatprep.subr.mxu0 0.0
        %2295 = vmatpush2.msra.mxu0 0.0
        %2296 = vmatprep.subr.mxu0 0.0
        %2297 = vmatpush2.msra.mxu0 0.0
        %2298 = vmatprep.subr.mxu0 0.0
        %2299 = vmatpush2.msra.mxu0 0.0
        %2300 = vmatprep.subr.mxu0 0.0
        %2301 = vmatpush2.msra.mxu0 0.0
        %2302 = vmatprep.mubr.f32.mxu0 0.0
        %2303 = vmatmul.mubr.f32.gmra.mxu0 %v1747
        %v2304 = vpop.f32.mrf.mxu0
        %v2305 = vadd.f32 0.0, %v2304
        %v2306 = vpop.f32.mrf.mxu0
        %v2307 = vadd.f32 0.0, %v2306
        %2308 = vmatprep.mubr.f32.mxu0 0.0
        %2309 = vmatmul.mubr.f32.gmra.mxu0 %v1752
        %v2310 = vpop.f32.mrf.mxu0
        %v2311 = vpop.f32.mrf.mxu0
        %2312 = vdwg.mxu0
        %2313 = vmatprep.subr.mxu0 %v2006
        %2314 = vmatpush1.msra.mxu0 %v2005
        %2315 = vmatprep.subr.mxu0 %v1990
        %2316 = vmatpush1.msra.mxu0 %v1989
        %2317 = vmatprep.subr.mxu0 %v1974
        %2318 = vmatpush1.msra.mxu0 %v1973
        %2319 = vmatprep.subr.mxu0 %v1958
        %2320 = vmatpush1.msra.mxu0 %v1957
        %2321 = vmatprep.subr.mxu0 %v1942
        %2322 = vmatpush1.msra.mxu0 %v1941
        %2323 = vmatprep.subr.mxu0 %v1926
        %2324 = vmatpush1.msra.mxu0 %v1925
        %2325 = vmatprep.subr.mxu0 %v1910
        %2326 = vmatpush1.msra.mxu0 %v1909
        %2327 = vmatprep.subr.mxu0 %v1894
        %2328 = vmatpush1.msra.mxu0 %v1893
        %2329 = vmatprep.subr.mxu0 %v1878
        %2330 = vmatpush1.msra.mxu0 %v1877
        %2331 = vmatprep.subr.mxu0 %v1862
        %2332 = vmatpush1.msra.mxu0 %v1861
        %2333 = vmatprep.subr.mxu0 %v1846
        %2334 = vmatpush1.msra.mxu0 %v1845
        %2335 = vmatprep.subr.mxu0 %v1830
        %2336 = vmatpush1.msra.mxu0 %v1829
        %2337 = vmatprep.subr.mxu0 %v1814
        %2338 = vmatpush1.msra.mxu0 %v1813
        %2339 = vmatprep.subr.mxu0 %v1798
        %2340 = vmatpush1.msra.mxu0 %v1797
        %2341 = vmatprep.subr.mxu0 %v1782
        %2342 = vmatpush1.msra.mxu0 %v1781
        %2343 = vmatprep.subr.mxu0 %v1766
        %2344 = vmatpush1.msra.mxu0 %v1765
        %2345 = vmatprep.subr.mxu0 0.0
        %2346 = vmatpush2.msra.mxu0 0.0
        %2347 = vmatprep.subr.mxu0 0.0
        %2348 = vmatpush2.msra.mxu0 0.0
        %2349 = vmatprep.subr.mxu0 0.0
        %2350 = vmatpush2.msra.mxu0 0.0
        %2351 = vmatprep.subr.mxu0 0.0
        %2352 = vmatpush2.msra.mxu0 0.0
        %2353 = vmatprep.subr.mxu0 0.0
        %2354 = vmatpush2.msra.mxu0 0.0
        %2355 = vmatprep.subr.mxu0 0.0
        %2356 = vmatpush2.msra.mxu0 0.0
        %2357 = vmatprep.subr.mxu0 0.0
        %2358 = vmatpush2.msra.mxu0 0.0
        %2359 = vmatprep.subr.mxu0 0.0
        %2360 = vmatpush2.msra.mxu0 0.0
        %2361 = vmatprep.subr.mxu0 0.0
        %2362 = vmatpush2.msra.mxu0 0.0
        %2363 = vmatprep.subr.mxu0 0.0
        %2364 = vmatpush2.msra.mxu0 0.0
        %2365 = vmatprep.subr.mxu0 0.0
        %2366 = vmatpush2.msra.mxu0 0.0
        %2367 = vmatprep.subr.mxu0 0.0
        %2368 = vmatpush2.msra.mxu0 0.0
        %2369 = vmatprep.subr.mxu0 0.0
        %2370 = vmatpush2.msra.mxu0 0.0
        %2371 = vmatprep.subr.mxu0 0.0
        %2372 = vmatpush2.msra.mxu0 0.0
        %2373 = vmatprep.subr.mxu0 0.0
        %2374 = vmatpush2.msra.mxu0 0.0
        %2375 = vmatprep.subr.mxu0 0.0
        %2376 = vmatpush2.msra.mxu0 0.0
        %2377 = vmatprep.mubr.f32.mxu0 0.0
        %2378 = vmatmul.mubr.f32.gmra.mxu0 %v1747
        %v2379 = vpop.f32.mrf.mxu0
        %v2380 = vpop.f32.mrf.mxu0
        %2381 = vmatprep.mubr.f32.mxu0 0.0
        %2382 = vmatmul.mubr.f32.gmra.mxu0 %v1752
        %v2383 = vpop.f32.mrf.mxu0
        %v2384 = vadd.f32 0.0, %v2383
        %v2385 = vpop.f32.mrf.mxu0
        %v2386 = vadd.f32 0.0, %v2385
        %2387 = vdwg.mxu0
        %2388 = vmatprep.subr.mxu0 %v2008
        %2389 = vmatpush1.msra.mxu0 %v2007
        %2390 = vmatprep.subr.mxu0 %v1992
        %2391 = vmatpush1.msra.mxu0 %v1991
        %2392 = vmatprep.subr.mxu0 %v1976
        %2393 = vmatpush1.msra.mxu0 %v1975
        %2394 = vmatprep.subr.mxu0 %v1960
        %2395 = vmatpush1.msra.mxu0 %v1959
        %2396 = vmatprep.subr.mxu0 %v1944
        %2397 = vmatpush1.msra.mxu0 %v1943
        %2398 = vmatprep.subr.mxu0 %v1928
        %2399 = vmatpush1.msra.mxu0 %v1927
        %2400 = vmatprep.subr.mxu0 %v1912
        %2401 = vmatpush1.msra.mxu0 %v1911
        %2402 = vmatprep.subr.mxu0 %v1896
        %2403 = vmatpush1.msra.mxu0 %v1895
        %2404 = vmatprep.subr.mxu0 %v1880
        %2405 = vmatpush1.msra.mxu0 %v1879
        %2406 = vmatprep.subr.mxu0 %v1864
        %2407 = vmatpush1.msra.mxu0 %v1863
        %2408 = vmatprep.subr.mxu0 %v1848
        %2409 = vmatpush1.msra.mxu0 %v1847
        %2410 = vmatprep.subr.mxu0 %v1832
        %2411 = vmatpush1.msra.mxu0 %v1831
        %2412 = vmatprep.subr.mxu0 %v1816
        %2413 = vmatpush1.msra.mxu0 %v1815
        %2414 = vmatprep.subr.mxu0 %v1800
        %2415 = vmatpush1.msra.mxu0 %v1799
        %2416 = vmatprep.subr.mxu0 %v1784
        %2417 = vmatpush1.msra.mxu0 %v1783
        %2418 = vmatprep.subr.mxu0 %v1768
        %2419 = vmatpush1.msra.mxu0 %v1767
        %2420 = vmatprep.subr.mxu0 0.0
        %2421 = vmatpush2.msra.mxu0 0.0
        %2422 = vmatprep.subr.mxu0 0.0
        %2423 = vmatpush2.msra.mxu0 0.0
        %2424 = vmatprep.subr.mxu0 0.0
        %2425 = vmatpush2.msra.mxu0 0.0
        %2426 = vmatprep.subr.mxu0 0.0
        %2427 = vmatpush2.msra.mxu0 0.0
        %2428 = vmatprep.subr.mxu0 0.0
        %2429 = vmatpush2.msra.mxu0 0.0
        %2430 = vmatprep.subr.mxu0 0.0
        %2431 = vmatpush2.msra.mxu0 0.0
        %2432 = vmatprep.subr.mxu0 0.0
        %2433 = vmatpush2.msra.mxu0 0.0
        %2434 = vmatprep.subr.mxu0 0.0
        %2435 = vmatpush2.msra.mxu0 0.0
        %2436 = vmatprep.subr.mxu0 0.0
        %2437 = vmatpush2.msra.mxu0 0.0
        %2438 = vmatprep.subr.mxu0 0.0
        %2439 = vmatpush2.msra.mxu0 0.0
        %2440 = vmatprep.subr.mxu0 0.0
        %2441 = vmatpush2.msra.mxu0 0.0
        %2442 = vmatprep.subr.mxu0 0.0
        %2443 = vmatpush2.msra.mxu0 0.0
        %2444 = vmatprep.subr.mxu0 0.0
        %2445 = vmatpush2.msra.mxu0 0.0
        %2446 = vmatprep.subr.mxu0 0.0
        %2447 = vmatpush2.msra.mxu0 0.0
        %2448 = vmatprep.subr.mxu0 0.0
        %2449 = vmatpush2.msra.mxu0 0.0
        %2450 = vmatprep.subr.mxu0 0.0
        %2451 = vmatpush2.msra.mxu0 0.0
        %2452 = vmatprep.mubr.f32.mxu0 0.0
        %2453 = vmatmul.mubr.f32.gmra.mxu0 %v1747
        %v2454 = vpop.f32.mrf.mxu0
        %v2455 = vpop.f32.mrf.mxu0
        %2456 = vmatprep.mubr.f32.mxu0 0.0
        %2457 = vmatmul.mubr.f32.gmra.mxu0 %v1752
        %v2458 = vpop.f32.mrf.mxu0
        %v2459 = vadd.f32 0.0, %v2458
        %v2460 = vpop.f32.mrf.mxu0
        %v2461 = vadd.f32 0.0, %v2460
        %2462 = vdwg.mxu0
        %2463 = vmatprep.subr.mxu0 %v2010
        %2464 = vmatpush1.msra.mxu0 %v2009
        %2465 = vmatprep.subr.mxu0 %v1994
        %2466 = vmatpush1.msra.mxu0 %v1993
        %2467 = vmatprep.subr.mxu0 %v1978
        %2468 = vmatpush1.msra.mxu0 %v1977
        %2469 = vmatprep.subr.mxu0 %v1962
        %2470 = vmatpush1.msra.mxu0 %v1961
        %2471 = vmatprep.subr.mxu0 %v1946
        %2472 = vmatpush1.msra.mxu0 %v1945
        %2473 = vmatprep.subr.mxu0 %v1930
        %2474 = vmatpush1.msra.mxu0 %v1929
        %2475 = vmatprep.subr.mxu0 %v1914
        %2476 = vmatpush1.msra.mxu0 %v1913
        %2477 = vmatprep.subr.mxu0 %v1898
        %2478 = vmatpush1.msra.mxu0 %v1897
        %2479 = vmatprep.subr.mxu0 %v1882
        %2480 = vmatpush1.msra.mxu0 %v1881
        %2481 = vmatprep.subr.mxu0 %v1866
        %2482 = vmatpush1.msra.mxu0 %v1865
        %2483 = vmatprep.subr.mxu0 %v1850
        %2484 = vmatpush1.msra.mxu0 %v1849
        %2485 = vmatprep.subr.mxu0 %v1834
        %2486 = vmatpush1.msra.mxu0 %v1833
        %2487 = vmatprep.subr.mxu0 %v1818
        %2488 = vmatpush1.msra.mxu0 %v1817
        %2489 = vmatprep.subr.mxu0 %v1802
        %2490 = vmatpush1.msra.mxu0 %v1801
        %2491 = vmatprep.subr.mxu0 %v1786
        %2492 = vmatpush1.msra.mxu0 %v1785
        %2493 = vmatprep.subr.mxu0 %v1770
        %2494 = vmatpush1.msra.mxu0 %v1769
        %2495 = vmatprep.subr.mxu0 0.0
        %2496 = vmatpush2.msra.mxu0 0.0
        %2497 = vmatprep.subr.mxu0 0.0
        %2498 = vmatpush2.msra.mxu0 0.0
        %2499 = vmatprep.subr.mxu0 0.0
        %2500 = vmatpush2.msra.mxu0 0.0
        %2501 = vmatprep.subr.mxu0 0.0
        %2502 = vmatpush2.msra.mxu0 0.0
        %2503 = vmatprep.subr.mxu0 0.0
        %2504 = vmatpush2.msra.mxu0 0.0
        %2505 = vmatprep.subr.mxu0 0.0
        %2506 = vmatpush2.msra.mxu0 0.0
        %2507 = vmatprep.subr.mxu0 0.0
        %2508 = vmatpush2.msra.mxu0 0.0
        %2509 = vmatprep.subr.mxu0 0.0
        %2510 = vmatpush2.msra.mxu0 0.0
        %2511 = vmatprep.subr.mxu0 0.0
        %2512 = vmatpush2.msra.mxu0 0.0
        %2513 = vmatprep.subr.mxu0 0.0
        %2514 = vmatpush2.msra.mxu0 0.0
        %2515 = vmatprep.subr.mxu0 0.0
        %2516 = vmatpush2.msra.mxu0 0.0
        %2517 = vmatprep.subr.mxu0 0.0
        %2518 = vmatpush2.msra.mxu0 0.0
        %2519 = vmatprep.subr.mxu0 0.0
        %2520 = vmatpush2.msra.mxu0 0.0
        %2521 = vmatprep.subr.mxu0 0.0
        %2522 = vmatpush2.msra.mxu0 0.0
        %2523 = vmatprep.subr.mxu0 0.0
        %2524 = vmatpush2.msra.mxu0 0.0
        %2525 = vmatprep.subr.mxu0 0.0
        %2526 = vmatpush2.msra.mxu0 0.0
        %2527 = vmatprep.mubr.f32.mxu0 0.0
        %2528 = vmatmul.mubr.f32.gmra.mxu0 %v1747
        %v2529 = vpop.f32.mrf.mxu0
        %v2530 = vpop.f32.mrf.mxu0
        %2531 = vmatprep.mubr.f32.mxu0 0.0
        %2532 = vmatmul.mubr.f32.gmra.mxu0 %v1752
        %v2533 = vpop.f32.mrf.mxu0
        %v2534 = vadd.f32 0.0, %v2533
        %v2535 = vpop.f32.mrf.mxu0
        %v2536 = vadd.f32 0.0, %v2535
        %2537 = vdwg.mxu0
        %2538 = vmatprep.subr.mxu0 %v2012
        %2539 = vmatpush1.msra.mxu0 %v2011
        %2540 = vmatprep.subr.mxu0 %v1996
        %2541 = vmatpush1.msra.mxu0 %v1995
        %2542 = vmatprep.subr.mxu0 %v1980
        %2543 = vmatpush1.msra.mxu0 %v1979
        %2544 = vmatprep.subr.mxu0 %v1964
        %2545 = vmatpush1.msra.mxu0 %v1963
        %2546 = vmatprep.subr.mxu0 %v1948
        %2547 = vmatpush1.msra.mxu0 %v1947
        %2548 = vmatprep.subr.mxu0 %v1932
        %2549 = vmatpush1.msra.mxu0 %v1931
        %2550 = vmatprep.subr.mxu0 %v1916
        %2551 = vmatpush1.msra.mxu0 %v1915
        %2552 = vmatprep.subr.mxu0 %v1900
        %2553 = vmatpush1.msra.mxu0 %v1899
        %2554 = vmatprep.subr.mxu0 %v1884
        %2555 = vmatpush1.msra.mxu0 %v1883
        %2556 = vmatprep.subr.mxu0 %v1868
        %2557 = vmatpush1.msra.mxu0 %v1867
        %2558 = vmatprep.subr.mxu0 %v1852
        %2559 = vmatpush1.msra.mxu0 %v1851
        %2560 = vmatprep.subr.mxu0 %v1836
        %2561 = vmatpush1.msra.mxu0 %v1835
        %2562 = vmatprep.subr.mxu0 %v1820
        %2563 = vmatpush1.msra.mxu0 %v1819
        %2564 = vmatprep.subr.mxu0 %v1804
        %2565 = vmatpush1.msra.mxu0 %v1803
        %2566 = vmatprep.subr.mxu0 %v1788
        %2567 = vmatpush1.msra.mxu0 %v1787
        %2568 = vmatprep.subr.mxu0 %v1772
        %2569 = vmatpush1.msra.mxu0 %v1771
        %2570 = vmatprep.subr.mxu0 0.0
        %2571 = vmatpush2.msra.mxu0 0.0
        %2572 = vmatprep.subr.mxu0 0.0
        %2573 = vmatpush2.msra.mxu0 0.0
        %2574 = vmatprep.subr.mxu0 0.0
        %2575 = vmatpush2.msra.mxu0 0.0
        %2576 = vmatprep.subr.mxu0 0.0
        %2577 = vmatpush2.msra.mxu0 0.0
        %2578 = vmatprep.subr.mxu0 0.0
        %2579 = vmatpush2.msra.mxu0 0.0
        %2580 = vmatprep.subr.mxu0 0.0
        %2581 = vmatpush2.msra.mxu0 0.0
        %2582 = vmatprep.subr.mxu0 0.0
        %2583 = vmatpush2.msra.mxu0 0.0
        %2584 = vmatprep.subr.mxu0 0.0
        %2585 = vmatpush2.msra.mxu0 0.0
        %2586 = vmatprep.subr.mxu0 0.0
        %2587 = vmatpush2.msra.mxu0 0.0
        %2588 = vmatprep.subr.mxu0 0.0
        %2589 = vmatpush2.msra.mxu0 0.0
        %2590 = vmatprep.subr.mxu0 0.0
        %2591 = vmatpush2.msra.mxu0 0.0
        %2592 = vmatprep.subr.mxu0 0.0
        %2593 = vmatpush2.msra.mxu0 0.0
        %2594 = vmatprep.subr.mxu0 0.0
        %2595 = vmatpush2.msra.mxu0 0.0
        %2596 = vmatprep.subr.mxu0 0.0
        %2597 = vmatpush2.msra.mxu0 0.0
        %2598 = vmatprep.subr.mxu0 0.0
        %2599 = vmatpush2.msra.mxu0 0.0
        %2600 = vmatprep.subr.mxu0 0.0
        %2601 = vmatpush2.msra.mxu0 0.0
        %2602 = vmatprep.mubr.f32.mxu0 0.0
        %2603 = vmatmul.mubr.f32.gmra.mxu0 %v1747
        %v2604 = vpop.f32.mrf.mxu0
        %v2605 = vpop.f32.mrf.mxu0
        %2606 = vmatprep.mubr.f32.mxu0 0.0
        %2607 = vmatmul.mubr.f32.gmra.mxu0 %v1752
        %v2608 = vpop.f32.mrf.mxu0
        %v2609 = vadd.f32 0.0, %v2608
        %v2610 = vpop.f32.mrf.mxu0
        %v2611 = vadd.f32 0.0, %v2610
        %2612 = vdwg.mxu0
        %v2613 = vld [vmem:[%s5] sm:$0x1]
        %v2614 = vadd.f32 %v2613, %v2080
        %v2617 = vunpack.c.l.s4 1966171168
        %v2618 = vunpack.c.0.s8 %v2617
        %v2619 = vlaneseq
        %v2620 = vshrl.u32 %v2619, 7
        %v2621 = vsub.s32 %v2618, %v2620
        %v2622 = vrot.slane %v2082, %v2621
        %v2623 = vcombine.high %v2622, %v2622
        %v2625 = vunpack.c.l.s4 1966171168
        %v2626 = vunpack.c.0.s8 %v2625
        %v2627 = vlaneseq
        %v2628 = vshrl.u32 %v2627, 7
        %v2629 = vsub.s32 %v2626, %v2628
        %v2630 = vrot.slane %v2623, %v2629
        %v2632 = vadd.f32 %v2614, %v2630
        %v2635 = vunpack.c.l.s4 1966171168
        %v2636 = vunpack.c.0.s8 %v2635
        %v2637 = vlaneseq
        %v2638 = vshrl.u32 %v2637, 7
        %v2639 = vsub.s32 %v2636, %v2638
        %v2640 = vrot.slane %v2155, %v2639
        %v2642 = vunpack.c.l.s4 1966171168
        %v2643 = vunpack.c.0.s8 %v2642
        %v2644 = vlaneseq
        %v2645 = vshrl.u32 %v2644, 7
        %v2646 = vsub.s32 %v2643, %v2645
        %v2647 = vrot.slane %v2640, %v2646
        %v2648 = vcombine.high %v2647, %v2647
        %v2650 = vadd.f32 %v2632, %v2648
        %v2653 = vunpack.c.l.s4 1966171168
        %v2654 = vunpack.c.0.s8 %v2653
        %v2655 = vlaneseq
        %v2656 = vshrl.u32 %v2655, 7
        %v2657 = vsub.s32 %v2654, %v2656
        %v2658 = vrot.slane %v2157, %v2657
        %v2659 = vcombine.high %v2658, %v2658
        %v2661 = vunpack.c.l.s4 1966171168
        %v2662 = vunpack.c.0.s8 %v2661
        %v2663 = vlaneseq
        %v2664 = vshrl.u32 %v2663, 7
        %v2665 = vsub.s32 %v2662, %v2664
        %v2666 = vrot.slane %v2659, %v2665
        %v2667 = vcombine.high %v2666, %v2666
        %v2669 = vadd.f32 %v2650, %v2667
        %v2671 = vcombine.high %v2230, %v2230
        %v2673 = vunpack.c.l.s4 1966171168
        %v2674 = vunpack.c.0.s8 %v2673
        %v2675 = vlaneseq
        %v2676 = vshrl.u32 %v2675, 7
        %v2677 = vsub.s32 %v2674, %v2676
        %v2678 = vrot.slane %v2671, %v2677
        %v2680 = vunpack.c.l.s4 1966171168
        %v2681 = vunpack.c.0.s8 %v2680
        %v2682 = vlaneseq
        %v2683 = vshrl.u32 %v2682, 7
        %v2684 = vsub.s32 %v2681, %v2683
        %v2685 = vrot.slane %v2678, %v2684
        %v2687 = vadd.f32 %v2669, %v2685
        %v2689 = vcombine.high %v2232, %v2232
        %v2691 = vunpack.c.l.s4 1966171168
        %v2692 = vunpack.c.0.s8 %v2691
        %v2693 = vlaneseq
        %v2694 = vshrl.u32 %v2693, 7
        %v2695 = vsub.s32 %v2692, %v2694
        %v2696 = vrot.slane %v2689, %v2695
        %v2697 = vcombine.high %v2696, %v2696
        %v2699 = vunpack.c.l.s4 1966171168
        %v2700 = vunpack.c.0.s8 %v2699
        %v2701 = vlaneseq
        %v2702 = vshrl.u32 %v2701, 7
        %v2703 = vsub.s32 %v2700, %v2702
        %v2704 = vrot.slane %v2697, %v2703
        %v2706 = vadd.f32 %v2687, %v2704
        %v2708 = vcombine.high %v2305, %v2305
        %v2710 = vunpack.c.l.s4 1966171168
        %v2711 = vunpack.c.0.s8 %v2710
        %v2712 = vlaneseq
        %v2713 = vshrl.u32 %v2712, 7
        %v2714 = vsub.s32 %v2711, %v2713
        %v2715 = vrot.slane %v2708, %v2714
        %v2717 = vunpack.c.l.s4 1966171168
        %v2718 = vunpack.c.0.s8 %v2717
        %v2719 = vlaneseq
        %v2720 = vshrl.u32 %v2719, 7
        %v2721 = vsub.s32 %v2718, %v2720
        %v2722 = vrot.slane %v2715, %v2721
        %v2723 = vcombine.high %v2722, %v2722
        %v2725 = vadd.f32 %v2706, %v2723
        %v2727 = vcombine.high %v2307, %v2307
        %v2729 = vunpack.c.l.s4 1966171168
        %v2730 = vunpack.c.0.s8 %v2729
        %v2731 = vlaneseq
        %v2732 = vshrl.u32 %v2731, 7
        %v2733 = vsub.s32 %v2730, %v2732
        %v2734 = vrot.slane %v2727, %v2733
        %v2735 = vcombine.high %v2734, %v2734
        %v2737 = vunpack.c.l.s4 1966171168
        %v2738 = vunpack.c.0.s8 %v2737
        %v2739 = vlaneseq
        %v2740 = vshrl.u32 %v2739, 7
        %v2741 = vsub.s32 %v2738, %v2740
        %v2742 = vrot.slane %v2735, %v2741
        %v2743 = vcombine.high %v2742, %v2742
        %v2745 = vadd.f32 %v2725, %v2743
        %v2746 = vadd.f32 %v2745, %v2384
        %v2749 = vunpack.c.l.s4 1966171168
        %v2750 = vunpack.c.0.s8 %v2749
        %v2751 = vlaneseq
        %v2752 = vshrl.u32 %v2751, 7
        %v2753 = vsub.s32 %v2750, %v2752
        %v2754 = vrot.slane %v2386, %v2753
        %v2755 = vcombine.high %v2754, %v2754
        %v2757 = vunpack.c.l.s4 1966171168
        %v2758 = vunpack.c.0.s8 %v2757
        %v2759 = vlaneseq
        %v2760 = vshrl.u32 %v2759, 7
        %v2761 = vsub.s32 %v2758, %v2760
        %v2762 = vrot.slane %v2755, %v2761
        %v2764 = vadd.f32 %v2746, %v2762
        %v2767 = vunpack.c.l.s4 1966171168
        %v2768 = vunpack.c.0.s8 %v2767
        %v2769 = vlaneseq
        %v2770 = vshrl.u32 %v2769, 7
        %v2771 = vsub.s32 %v2768, %v2770
        %v2772 = vrot.slane %v2459, %v2771
        %v2774 = vunpack.c.l.s4 1966171168
        %v2775 = vunpack.c.0.s8 %v2774
        %v2776 = vlaneseq
        %v2777 = vshrl.u32 %v2776, 7
        %v2778 = vsub.s32 %v2775, %v2777
        %v2779 = vrot.slane %v2772, %v2778
        %v2780 = vcombine.high %v2779, %v2779
        %v2782 = vadd.f32 %v2764, %v2780
        %v2785 = vunpack.c.l.s4 1966171168
        %v2786 = vunpack.c.0.s8 %v2785
        %v2787 = vlaneseq
        %v2788 = vshrl.u32 %v2787, 7
        %v2789 = vsub.s32 %v2786, %v2788
        %v2790 = vrot.slane %v2461, %v2789
        %v2791 = vcombine.high %v2790, %v2790
        %v2793 = vunpack.c.l.s4 1966171168
        %v2794 = vunpack.c.0.s8 %v2793
        %v2795 = vlaneseq
        %v2796 = vshrl.u32 %v2795, 7
        %v2797 = vsub.s32 %v2794, %v2796
        %v2798 = vrot.slane %v2791, %v2797
        %v2799 = vcombine.high %v2798, %v2798
        %v2801 = vadd.f32 %v2782, %v2799
        %v2803 = vcombine.high %v2534, %v2534
        %v2805 = vunpack.c.l.s4 1966171168
        %v2806 = vunpack.c.0.s8 %v2805
        %v2807 = vlaneseq
        %v2808 = vshrl.u32 %v2807, 7
        %v2809 = vsub.s32 %v2806, %v2808
        %v2810 = vrot.slane %v2803, %v2809
        %v2812 = vunpack.c.l.s4 1966171168
        %v2813 = vunpack.c.0.s8 %v2812
        %v2814 = vlaneseq
        %v2815 = vshrl.u32 %v2814, 7
        %v2816 = vsub.s32 %v2813, %v2815
        %v2817 = vrot.slane %v2810, %v2816
        %v2819 = vadd.f32 %v2801, %v2817
        %v2821 = vcombine.high %v2536, %v2536
        %v2823 = vunpack.c.l.s4 1966171168
        %v2824 = vunpack.c.0.s8 %v2823
        %v2825 = vlaneseq
        %v2826 = vshrl.u32 %v2825, 7
        %v2827 = vsub.s32 %v2824, %v2826
        %v2828 = vrot.slane %v2821, %v2827
        %v2829 = vcombine.high %v2828, %v2828
        %v2831 = vunpack.c.l.s4 1966171168
        %v2832 = vunpack.c.0.s8 %v2831
        %v2833 = vlaneseq
        %v2834 = vshrl.u32 %v2833, 7
        %v2835 = vsub.s32 %v2832, %v2834
        %v2836 = vrot.slane %v2829, %v2835
        %v2838 = vadd.f32 %v2819, %v2836
        %v2840 = vcombine.high %v2609, %v2609
        %v2842 = vunpack.c.l.s4 1966171168
        %v2843 = vunpack.c.0.s8 %v2842
        %v2844 = vlaneseq
        %v2845 = vshrl.u32 %v2844, 7
        %v2846 = vsub.s32 %v2843, %v2845
        %v2847 = vrot.slane %v2840, %v2846
        %v2849 = vunpack.c.l.s4 1966171168
        %v2850 = vunpack.c.0.s8 %v2849
        %v2851 = vlaneseq
        %v2852 = vshrl.u32 %v2851, 7
        %v2853 = vsub.s32 %v2850, %v2852
        %v2854 = vrot.slane %v2847, %v2853
        %v2855 = vcombine.high %v2854, %v2854
        %v2857 = vadd.f32 %v2838, %v2855
        %v2859 = vcombine.high %v2611, %v2611
        %v2861 = vunpack.c.l.s4 1966171168
        %v2862 = vunpack.c.0.s8 %v2861
        %v2863 = vlaneseq
        %v2864 = vshrl.u32 %v2863, 7
        %v2865 = vsub.s32 %v2862, %v2864
        %v2866 = vrot.slane %v2859, %v2865
        %v2867 = vcombine.high %v2866, %v2866
        %v2869 = vunpack.c.l.s4 1966171168
        %v2870 = vunpack.c.0.s8 %v2869
        %v2871 = vlaneseq
        %v2872 = vshrl.u32 %v2871, 7
        %v2873 = vsub.s32 %v2870, %v2872
        %v2874 = vrot.slane %v2867, %v2873
        %v2875 = vcombine.high %v2874, %v2874
        %v2877 = vadd.f32 %v2857, %v2875
        %2878 = vst [vmem:[%s278] sm:$0x1] %v2877
        %p2879 = scmp.lt.s32.totalorder %s22, 1
        %s2880 = scalar_select %p2879, %s22, 1
        %s2881 = smul.addr %s2880, 2
        %s2882 = smul.addr %s2881, 8
        %s2883 = scalar_lea.vmem %s6, %s2882
        %s2884 = sand.u32 %s187, 1
        %s2885 = scalar_lea.sflag [#allocation3], %s2884
        %s2886 = sand.u32 %s187, 1
        %s2887 = scalar_lea.vmem [#allocation2], %s2886
        // Predicated region
        $region45: #{cnn_forward.1} parent=43 // pred_check
          %p2888 = pneg %p171
        $region46: #{cnn_forward.1} parent=43 // pred_check_branch
          %2890 = sbr.rel (%p2888) target = $region48
        $region47: #{cnn_forward.1} parent=43 // pred_region
          _
        $region48: #{cnn_forward.1} parent=43 // pred_fallthru
          _
        // Predicated region
        $region49: #{cnn_forward.1} parent=43 // pred_check
          %p2891 = pneg %p197
        $region50: #{cnn_forward.1} parent=43 // pred_check_branch
          %2893 = sbr.rel (%p2891) target = $region52
        $region51: #{cnn_forward.1} parent=43 // pred_region
          %s2895 = ssub.s32 16, 16
          %2896 = vsyncadd %s2885, %s2895
          %s2897 = smul.addr %s22, 16
          %s2898 = scalar_lea.hbm %s7, %s2897
          %s2900 = sshll.u32 %s2887, 4
          %s2901 = int_to_ptr.vmem [resolvable:$true] %s2900
          %2903 = dma.vmem_to_hbm [thread:$0]  %s2901, 16, %s2898, %s2885
        $region52: #{cnn_forward.1} parent=43 // pred_fallthru
          _
      $region44: #{cnn_forward.1} parent=5 // pred_fallthru
        _
      %p2904 = scmp.le.s32.totalorder 2, %s17
      // Predicated region
      $region53: #{cnn_forward.1} parent=5 // pred_check
        %p2905 = pneg %p2904
      $region54: #{cnn_forward.1} parent=5 // pred_check_branch
        %2907 = sbr.rel (%p2905) target = $region56
      $region55: #{cnn_forward.1} parent=5 // pred_region
        %s2908 = ssub.s32 %s17, 2
        // Predicated region
        $region57: #{cnn_forward.1} parent=55 // pred_check
          %p2909 = pneg %p177
        $region58: #{cnn_forward.1} parent=55 // pred_check_branch
          %2911 = sbr.rel (%p2909) target = $region60
        $region59: #{cnn_forward.1} parent=55 // pred_region
          %p2912 = scmp.lt.s32.totalorder %s23, 1
          %s2913 = scalar_select %p2912, %s23, 1
          %s2914 = smul.addr %s2913, 2
          %s2915 = smul.addr %s2914, 8
          %s2916 = scalar_lea.vmem %s6, %s2915
        $region60: #{cnn_forward.1} parent=55 // pred_fallthru
          _
        // Predicated region
        $region61: #{cnn_forward.1} parent=55 // pred_check
          %p2917 = pneg %p203
        $region62: #{cnn_forward.1} parent=55 // pred_check_branch
          %2919 = sbr.rel (%p2917) target = $region64
        $region63: #{cnn_forward.1} parent=55 // pred_region
          %s2920 = sand.u32 %s188, 1
          %s2921 = scalar_lea.sflag [#allocation3], %s2920
          %s2922 = sand.u32 %s188, 1
          %s2923 = scalar_lea.vmem [#allocation2], %s2922
          %2924 = dma.done %s2921, 16
        $region64: #{cnn_forward.1} parent=55 // pred_fallthru
          _
      $region56: #{cnn_forward.1} parent=5 // pred_fallthru
        _
    $region6: #{cnn_forward.1} parent=1 // loop_footer
      %s21 = sadd.s32 1, %s17
    $region7: #{cnn_forward.1} parent=1 // loop_footer_branch
      %16 = sbr.rel target = $region3
    $region8: #{cnn_forward.1} parent=1 // loop_exit
      _
    %2925 = vsyncpa [#allocation3], 1
    %s2926 = scalar_lea.sflag [#allocation3], 1
    %2927 = vsyncpa %s2926, 1

</llo_original>
